<compile_context>
chip_gen: v7x
topology: tpu7x:2x2x1
jax: 0.10.0
libtpu: 0.0.40
codegen_flags: <defaults>
</compile_context>

<pallas_src>
import functools
import math

import jax
import jax.numpy as jnp
from jax import lax
from jax.experimental import pallas as pl
from jax.experimental.pallas import tpu as pltpu

EPS = 1e-5


# --------------------------------------------------------------------------- #
# Kernels
# --------------------------------------------------------------------------- #
def _conv_bn_stats_kernel(x_ref, sc_ref, sh_ref, t_ref, out_ref, stats_ref,
                          ypad_ref, *, pre_relu):
    """One batch tile: (affine [+ReLU]) -> 3x3 conv -> conv out + per-lane BN moments.

    x_ref    : (1, H, W*Ci)   activation tile (f32 or compute_dtype)
    sc_ref   : (1, W*Ci)      per-channel scale, replicated over W, f32
    sh_ref   : (1, W*Ci)      per-channel shift, replicated over W, f32
    t_ref    : (3, W*Ci, W*Co) block-Toeplitz conv weights (compute dtype)
    out_ref  : (1, H, W*Co)   conv output (compute dtype)
    stats_ref: (1, 2, W*Co)   per-lane [mean over H, centered M2 over H], f32
    ypad_ref : (H+2, W*Ci)    VMEM staging scratch with zero halo rows
    """
    H = x_ref.shape[1]
    WCi = x_ref.shape[2]

    # Elementwise pre-activation in f32 on the VPU (identity for the first conv).
    y = x_ref[0].astype(jnp.float32) * sc_ref[...] + sh_ref[...]
    if pre_relu:
        y = jnp.maximum(y, 0.0)

    # Stage into the row-padded scratch; zero only the two halo rows.
    # (Zeroed every step: with a "parallel" batch grid the first program_id seen
    #  by a core may be nonzero, so gating on program_id==0 would be unsafe.)
    ypad_ref[0:1, :] = jnp.zeros((1, WCi), ypad_ref.dtype)
    ypad_ref[H + 1:H + 2, :] = jnp.zeros((1, WCi), ypad_ref.dtype)
    ypad_ref[1:H + 1, :] = y.astype(ypad_ref.dtype)

    # 3x3 conv == 3 MXU matmuls against block-Toeplitz weights, f32 accumulation.
    # TODO(synk): check bundle dump for relayout copies from the offset-1/2 row
    #             slices; if binding, switch to full-buffer matmuls + pltpu.roll.
    acc = jnp.dot(ypad_ref[0:H, :], t_ref[0],
                  preferred_element_type=jnp.float32)
    acc = acc + jnp.dot(ypad_ref[1:H + 1, :], t_ref[1],
                        preferred_element_type=jnp.float32)
    acc = acc + jnp.dot(ypad_ref[2:H + 2, :], t_ref[2],
                        preferred_element_type=jnp.float32)
    out_ref[0] = acc.astype(out_ref.dtype)

    # Per-lane (rows-only) centered BN moments from the f32 accumulator.
    # Lane -> channel reduction + Chan combine happens in host glue.
    mean_lane = jnp.sum(acc, axis=0, keepdims=True) * (1.0 / H)   # (1, W*Co)
    diff = acc - mean_lane
    m2_lane = jnp.sum(diff * diff, axis=0, keepdims=True)         # (1, W*Co)
    stats_ref[0, 0:1, :] = mean_lane
    stats_ref[0, 1:2, :] = m2_lane


def _bn_add_relu_kernel(a_ref, res_ref, sc_ref, sh_ref, out_ref):
    """bn2 (precomputed affine) + residual add + ReLU, fused lane-dense store."""
    out_ref[0] = jnp.maximum(
        a_ref[0].astype(jnp.float32) * sc_ref[...] + sh_ref[...] + res_ref[0],
        0.0)


# --------------------------------------------------------------------------- #
# pallas_call wrappers
# --------------------------------------------------------------------------- #
def _conv_bn_stats_call(x2d, scale_wc, shift_wc, tmat, *, pre_relu,
                        compute_dtype, vmem_limit):
    N, H, WCi = x2d.shape
    WCo = tmat.shape[2]
    kernel = functools.partial(_conv_bn_stats_kernel, pre_relu=pre_relu)
    return pl.pallas_call(
        kernel,
        out_shape=(jax.ShapeDtypeStruct((N, H, WCo), compute_dtype),
                   jax.ShapeDtypeStruct((N, 2, WCo), jnp.float32)),
        grid=(N,),
        in_specs=[
            pl.BlockSpec((1, H, WCi), lambda n: (n, 0, 0)),
            pl.BlockSpec((1, WCi), lambda n: (0, 0)),
            pl.BlockSpec((1, WCi), lambda n: (0, 0)),
            pl.BlockSpec((3, WCi, WCo), lambda n: (0, 0, 0)),
        ],
        out_specs=(pl.BlockSpec((1, H, WCo), lambda n: (n, 0, 0)),
                   pl.BlockSpec((1, 2, WCo), lambda n: (n, 0, 0))),
        scratch_shapes=[pltpu.VMEM((H + 2, WCi), compute_dtype)],
        compiler_params=pltpu.CompilerParams(
            dimension_semantics=("parallel",),
            vmem_limit_bytes=vmem_limit),
    )(x2d, scale_wc, shift_wc, tmat.astype(compute_dtype))


def _bn_add_relu_call(a2d, res2d, scale_wc, shift_wc, *, vmem_limit):
    N, H, WC = a2d.shape
    return pl.pallas_call(
        _bn_add_relu_kernel,
        out_shape=jax.ShapeDtypeStruct((N, H, WC), jnp.float32),
        grid=(N,),
        in_specs=[
            pl.BlockSpec((1, H, WC), lambda n: (n, 0, 0)),
            pl.BlockSpec((1, H, WC), lambda n: (n, 0, 0)),
            pl.BlockSpec((1, WC), lambda n: (0, 0)),
            pl.BlockSpec((1, WC), lambda n: (0, 0)),
        ],
        out_specs=pl.BlockSpec((1, H, WC), lambda n: (n, 0, 0)),
        compiler_params=pltpu.CompilerParams(
            dimension_semantics=("parallel",),
            vmem_limit_bytes=vmem_limit),
    )(a2d, res2d, scale_wc, shift_wc)


# --------------------------------------------------------------------------- #
# Host-side helpers (tiny glue)
# --------------------------------------------------------------------------- #
def _vmem_limit_bytes():
    """~75% of this generation's per-core VMEM (v5e/v6e ~96 MiB, v7x ~48 MiB)."""
    try:
        return int(pltpu.get_tpu_info().vmem_capacity_bytes * 3 // 4)
    except Exception:  # pragma: no cover - conservative fallback
        return 32 * 1024 * 1024


def _pad_channels(C, W):
    """Smallest Cp >= C with (W*Cp) % 128 == 0 (lane-dense stores, full MXU lanes)."""
    g = 128 // math.gcd(W, 128)
    return ((C + g - 1) // g) * g


def _build_toeplitz(w_oihw, W, Cp):
    """PyTorch conv weight (Cout, Cin, 3, 3) -> (3, W*Cp, W*Cp) block-Toeplitz
    with zero-padded channels."""
    Cout, Cin, KH, KW = w_oihw.shape
    wp = jnp.zeros((Cp, Cp, KH, KW), jnp.float32)
    wp = wp.at[:Cout, :Cin].set(w_oihw.astype(jnp.float32))
    wt = jnp.transpose(wp, (2, 3, 1, 0))                         # (KH, KW, Ci, Co)
    eye = jnp.eye(W, dtype=jnp.float32)
    rows = []
    for kh in range(KH):
        s = jnp.zeros(((W + 2) * Cp, W * Cp), jnp.float32)
        for kw in range(KW):
            blk = jnp.kron(eye, wt[kh, kw])                      # (W*Cp, W*Cp)
            s = s.at[kw * Cp:kw * Cp + W * Cp, :].add(blk)
        # drop rows that only ever multiply the zero width-padding
        rows.append(s[Cp:Cp + W * Cp, :])
    return jnp.stack(rows, axis=0)


def _combine_stats(stats, gamma, beta, C, W, H):
    """Per-lane (mean, centered M2, count=H) -> exact Chan combine over the
    N*W lane groups -> BN affine (scale, shift), padded + lane-replicated."""
    N = stats.shape[0]
    Cp = stats.shape[2] // W
    means = stats[:, 0, :].reshape(N, W, Cp)[:, :, :C]           # (N, W, C)
    m2s = stats[:, 1, :].reshape(N, W, Cp)[:, :, :C]             # (N, W, C)
    total = N * W * H
    grand_mean = jnp.mean(means, axis=(0, 1))                    # (C,)
    m2 = (jnp.sum(m2s, axis=(0, 1))
          + H * jnp.sum((means - grand_mean) ** 2, axis=(0, 1)))
    var = m2 / total                                             # biased (training BN)
    scale_c = gamma * lax.rsqrt(var + EPS)
    shift_c = beta - grand_mean * scale_c
    scale = jnp.zeros((Cp,), jnp.float32).at[:C].set(scale_c)    # padded lanes -> 0
    shift = jnp.zeros((Cp,), jnp.float32).at[:C].set(shift_c)
    return (jnp.tile(scale, W).reshape(1, W * Cp),
            jnp.tile(shift, W).reshape(1, W * Cp))


@functools.partial(jax.jit, static_argnames=("compute_dtype",))
def residual_block(x_nchw, w1, w2, g1, b1, g2, b2, *,
                   compute_dtype=jnp.bfloat16):
    """x: (N, Cin, H, W) NCHW; w*: PyTorch conv weights (Cout, Cin, 3, 3)."""
    N, Cin, H, W = x_nchw.shape
    Cout = w1.shape[0]
    assert Cin == Cout, "identity residual requires in_channels == out_channels"

    Cp = _pad_channels(Cout, W)
    WC = W * Cp
    vmem_limit = _vmem_limit_bytes()

    # Lane-dense activation layout: NCHW -> (N, H, W*Cp), channel-padded with zeros.
    x_nhwc = jnp.transpose(x_nchw, (0, 2, 3, 1)).astype(jnp.float32)
    if Cp > Cin:
        x_nhwc = jnp.pad(x_nhwc, ((0, 0), (0, 0), (0, 0), (0, Cp - Cin)))
    x2d = x_nhwc.reshape(N, H, WC)

    t1 = _build_toeplitz(w1, W, Cp)
    t2 = _build_toeplitz(w2, W, Cp)

    ones_wc = jnp.ones((1, WC), jnp.float32)
    zeros_wc = jnp.zeros((1, WC), jnp.float32)

    # pass 1: conv1 + per-lane stats
    a1, stats1 = _conv_bn_stats_call(x2d, ones_wc, zeros_wc, t1,
                                     pre_relu=False,
                                     compute_dtype=compute_dtype,
                                     vmem_limit=vmem_limit)
    s1, h1 = _combine_stats(stats1, g1.astype(jnp.float32),
                            b1.astype(jnp.float32), Cout, W, H)

    # pass 2: bn1 + relu + conv2 + per-lane stats
    a2, stats2 = _conv_bn_stats_call(a1, s1, h1, t2,
                                     pre_relu=True,
                                     compute_dtype=compute_dtype,
                                     vmem_limit=vmem_limit)
    s2, h2 = _combine_stats(stats2, g2.astype(jnp.float32),
                            b2.astype(jnp.float32), Cout, W, H)

    # pass 3: bn2 + fused residual add + relu
    out2d = _bn_add_relu_call(a2, x2d, s2, h2, vmem_limit=vmem_limit)

    out = out2d.reshape(N, H, W, Cp)[..., :Cout]
    return jnp.transpose(out, (0, 3, 1, 2))


# --------------------------------------------------------------------------- #
# Pure-JAX reference (PyTorch training-mode semantics)
# --------------------------------------------------------------------------- #
def _reference(x_nchw, w1, w2, g1, b1, g2, b2):
    def conv(x, w):
        return lax.conv_general_dilated(
            x, w, window_strides=(1, 1), padding=((1, 1), (1, 1)),
            dimension_numbers=("NCHW", "OIHW", "NCHW"))

    def bn(x, g, b):
        mean = jnp.mean(x, axis=(0, 2, 3), keepdims=True)
        var = jnp.mean((x - mean) ** 2, axis=(0, 2, 3), keepdims=True)  # biased
        return (x - mean) * lax.rsqrt(var + EPS) * g.reshape(1, -1, 1, 1) \
               + b.reshape(1, -1, 1, 1)

    out = jnp.maximum(bn(conv(x_nchw, w1), g1, b1), 0.0)
    out = bn(conv(out, w2), g2, b2)
    return jnp.maximum(out + x_nchw, 0.0)


if __name__ == "__main__":
    N, C, H, W = 2, 4, 16, 16  # in_channels == out_channels == 4

    key = jax.random.PRNGKey(0)
    kx, kw1, kw2 = jax.random.split(key, 3)

    x = jax.random.normal(kx, (N, C, H, W), dtype=jnp.float32)
    w1 = jax.random.normal(kw1, (C, C, 3, 3), dtype=jnp.float32) * 0.1
    w2 = jax.random.normal(kw2, (C, C, 3, 3), dtype=jnp.float32) * 0.1
    # BatchNorm2d default init: weight=1, bias=0
    g1 = jnp.ones((C,), jnp.float32)
    b1 = jnp.zeros((C,), jnp.float32)
    g2 = jnp.ones((C,), jnp.float32)
    b2 = jnp.zeros((C,), jnp.float32)

    ref = jax.block_until_ready(_reference(x, w1, w2, g1, b1, g2, b2))

    # f32 compute path: tight numerical check against the reference.
    out_f32 = jax.block_until_ready(
        residual_block(x, w1, w2, g1, b1, g2, b2, compute_dtype=jnp.float32))
    assert out_f32.shape == (N, C, H, W)
    assert jnp.allclose(out_f32, ref, atol=1e-4, rtol=1e-4), \
        f"f32 max err {jnp.max(jnp.abs(out_f32 - ref))}"

    # bf16-in / f32-accumulate MXU path with bf16 intermediates: loose check.
    out_bf16 = jax.block_until_ready(
        residual_block(x, w1, w2, g1, b1, g2, b2, compute_dtype=jnp.bfloat16))
    assert out_bf16.shape == (N, C, H, W)
    assert jnp.allclose(out_bf16, ref, atol=5e-2, rtol=5e-2), \
        f"bf16 max err {jnp.max(jnp.abs(out_bf16 - ref))}"

    print("KERNEL_OK")
</pallas_src>

<mosaic_0001>
module attributes {stable_mosaic.version = 11 : i64} {
  func.func @_conv_bn_stats_kernel(%arg0: i32, %arg1: memref<1x16x128xf32, #tpu.memory_space<vmem>>, %arg2: memref<1x128xf32, #tpu.memory_space<vmem>>, %arg3: memref<1x128xf32, #tpu.memory_space<vmem>>, %arg4: memref<3x128x128xf32, #tpu.memory_space<vmem>>, %arg5: memref<1x16x128xf32, #tpu.memory_space<vmem>>, %arg6: memref<1x2x128xf32, #tpu.memory_space<vmem>>, %arg7: memref<18x128xf32, #tpu.memory_space<vmem>>) attributes {dimension_semantics = [#tpu.dimension_semantics<parallel>], iteration_bounds = array<i64: 2>, scalar_prefetch = 0 : i64, scratch_operands = 1 : i64, tpu.core_type = #tpu.core_type<tc>, window_params = [{transform_indices = @transform_0, window_bounds = array<i64: 1, 16, 128>}, {pipeline_mode = #tpu.pipeline_mode<synchronous>, transform_indices = @transform_1, window_bounds = array<i64: 1, 128>}, {pipeline_mode = #tpu.pipeline_mode<synchronous>, transform_indices = @transform_2, window_bounds = array<i64: 1, 128>}, {pipeline_mode = #tpu.pipeline_mode<synchronous>, transform_indices = @transform_3, window_bounds = array<i64: 3, 128, 128>}, {transform_indices = @transform_4, window_bounds = array<i64: 1, 16, 128>}, {transform_indices = @transform_5, window_bounds = array<i64: 1, 2, 128>}]} {
    %c0 = arith.constant 0 : index
    %c0_0 = arith.constant 0 : index
    %c0_1 = arith.constant 0 : index
    %0 = vector.load %arg1[%c0, %c0_0, %c0_1] : memref<1x16x128xf32, #tpu.memory_space<vmem>>, vector<1x16x128xf32>
    %1 = vector.shape_cast %0 : vector<1x16x128xf32> to vector<16x128xf32>
    %c0_2 = arith.constant 0 : index
    %c0_3 = arith.constant 0 : index
    %2 = vector.load %arg2[%c0_2, %c0_3] : memref<1x128xf32, #tpu.memory_space<vmem>>, vector<1x128xf32>
    %3 = vector.broadcast %2 : vector<1x128xf32> to vector<16x128xf32>
    %4 = arith.mulf %1, %3 : vector<16x128xf32>
    %c0_4 = arith.constant 0 : index
    %c0_5 = arith.constant 0 : index
    %5 = vector.load %arg3[%c0_4, %c0_5] : memref<1x128xf32, #tpu.memory_space<vmem>>, vector<1x128xf32>
    %6 = vector.broadcast %5 : vector<1x128xf32> to vector<16x128xf32>
    %7 = arith.addf %4, %6 : vector<16x128xf32>
    %cst = arith.constant 0.000000e+00 : f32
    %8 = vector.broadcast %cst : f32 to vector<1x128xf32>
    %c0_6 = arith.constant 0 : index
    %c0_7 = arith.constant 0 : index
    %9 = vector.load %arg7[%c0_6, %c0_7] : memref<18x128xf32, #tpu.memory_space<vmem>>, vector<1x128xf32>
    tpu.vector_store %arg7[%c0_6, %c0_7], %8 {strides = array<i32>} : memref<18x128xf32, #tpu.memory_space<vmem>>, vector<1x128xf32>,
    %cst_8 = arith.constant 0.000000e+00 : f32
    %10 = vector.broadcast %cst_8 : f32 to vector<1x128xf32>
    %c17 = arith.constant 17 : index
    %c0_9 = arith.constant 0 : index
    %11 = vector.load %arg7[%c17, %c0_9] : memref<18x128xf32, #tpu.memory_space<vmem>>, vector<1x128xf32>
    tpu.vector_store %arg7[%c17, %c0_9], %10 {strides = array<i32>} : memref<18x128xf32, #tpu.memory_space<vmem>>, vector<1x128xf32>,
    %c1 = arith.constant 1 : index
    %c0_10 = arith.constant 0 : index
    %12 = vector.load %arg7[%c1, %c0_10] : memref<18x128xf32, #tpu.memory_space<vmem>>, vector<16x128xf32>
    tpu.vector_store %arg7[%c1, %c0_10], %7 {strides = array<i32>} : memref<18x128xf32, #tpu.memory_space<vmem>>, vector<16x128xf32>,
    %c0_11 = arith.constant 0 : index
    %c0_12 = arith.constant 0 : index
    %13 = vector.load %arg7[%c0_11, %c0_12] : memref<18x128xf32, #tpu.memory_space<vmem>>, vector<16x128xf32>
    %c0_13 = arith.constant 0 : index
    %c0_14 = arith.constant 0 : index
    %c0_15 = arith.constant 0 : index
    %14 = vector.load %arg4[%c0_13, %c0_14, %c0_15] : memref<3x128x128xf32, #tpu.memory_space<vmem>>, vector<1x128x128xf32>
    %15 = vector.shape_cast %14 : vector<1x128x128xf32> to vector<128x128xf32>
    %cst_16 = arith.constant dense<0.000000e+00> : vector<16x128xf32>
    %16 = tpu.matmul %13, %15, %cst_16 {dimension_numbers = #tpu.dot_dimension_numbers<[1], [0], [0], [1], [0, 0, 1, 1], [], []>} : vector<16x128xf32>, vector<128x128xf32>, vector<16x128xf32> -> vector<16x128xf32>
    %c1_17 = arith.constant 1 : index
    %c0_18 = arith.constant 0 : index
    %17 = vector.load %arg7[%c1_17, %c0_18] : memref<18x128xf32, #tpu.memory_space<vmem>>, vector<16x128xf32>
    %c1_19 = arith.constant 1 : index
    %c0_20 = arith.constant 0 : index
    %c0_21 = arith.constant 0 : index
    %18 = vector.load %arg4[%c1_19, %c0_20, %c0_21] : memref<3x128x128xf32, #tpu.memory_space<vmem>>, vector<1x128x128xf32>
    %19 = vector.shape_cast %18 : vector<1x128x128xf32> to vector<128x128xf32>
    %cst_22 = arith.constant dense<0.000000e+00> : vector<16x128xf32>
    %20 = tpu.matmul %17, %19, %cst_22 {dimension_numbers = #tpu.dot_dimension_numbers<[1], [0], [0], [1], [0, 0, 1, 1], [], []>} : vector<16x128xf32>, vector<128x128xf32>, vector<16x128xf32> -> vector<16x128xf32>
    %21 = arith.addf %16, %20 : vector<16x128xf32>
    %c2 = arith.constant 2 : index
    %c0_23 = arith.constant 0 : index
    %22 = vector.load %arg7[%c2, %c0_23] : memref<18x128xf32, #tpu.memory_space<vmem>>, vector<16x128xf32>
    %c2_24 = arith.constant 2 : index
    %c0_25 = arith.constant 0 : index
    %c0_26 = arith.constant 0 : index
    %23 = vector.load %arg4[%c2_24, %c0_25, %c0_26] : memref<3x128x128xf32, #tpu.memory_space<vmem>>, vector<1x128x128xf32>
    %24 = vector.shape_cast %23 : vector<1x128x128xf32> to vector<128x128xf32>
    %cst_27 = arith.constant dense<0.000000e+00> : vector<16x128xf32>
    %25 = tpu.matmul %22, %24, %cst_27 {dimension_numbers = #tpu.dot_dimension_numbers<[1], [0], [0], [1], [0, 0, 1, 1], [], []>} : vector<16x128xf32>, vector<128x128xf32>, vector<16x128xf32> -> vector<16x128xf32>
    %26 = arith.addf %21, %25 : vector<16x128xf32>
    %c0_28 = arith.constant 0 : index
    %c0_29 = arith.constant 0 : index
    %c0_30 = arith.constant 0 : index
    %27 = vector.load %arg5[%c0_28, %c0_29, %c0_30] : memref<1x16x128xf32, #tpu.memory_space<vmem>>, vector<1x16x128xf32>
    %28 = vector.shape_cast %27 : vector<1x16x128xf32> to vector<16x128xf32>
    %29 = vector.shape_cast %26 : vector<16x128xf32> to vector<1x16x128xf32>
    tpu.vector_store %arg5[%c0_28, %c0_29, %c0_30], %29 {strides = array<i32>} : memref<1x16x128xf32, #tpu.memory_space<vmem>>, vector<1x16x128xf32>,
    %cst_31 = arith.constant dense<0.000000e+00> : vector<128xf32>
    %30 = vector.multi_reduction <add>, %26, %cst_31 [0] : vector<16x128xf32> to vector<128xf32>
    %31 = vector.shape_cast %30 : vector<128xf32> to vector<1x128xf32>
    %cst_32 = arith.constant 6.250000e-02 : f32
    %32 = vector.broadcast %cst_32 : f32 to vector<1x128xf32>
    %33 = arith.mulf %31, %32 : vector<1x128xf32>
    %34 = vector.broadcast %33 : vector<1x128xf32> to vector<16x128xf32>
    %35 = arith.subf %26, %34 : vector<16x128xf32>
    %36 = arith.mulf %35, %35 : vector<16x128xf32>
    %cst_33 = arith.constant dense<0.000000e+00> : vector<128xf32>
    %37 = vector.multi_reduction <add>, %36, %cst_33 [0] : vector<16x128xf32> to vector<128xf32>
    %38 = vector.shape_cast %37 : vector<128xf32> to vector<1x128xf32>
    %c0_34 = arith.constant 0 : index
    %c0_35 = arith.constant 0 : index
    %c0_36 = arith.constant 0 : index
    %39 = vector.load %arg6[%c0_34, %c0_35, %c0_36] : memref<1x2x128xf32, #tpu.memory_space<vmem>>, vector<1x1x128xf32>
    %40 = vector.shape_cast %39 : vector<1x1x128xf32> to vector<1x128xf32>
    %41 = vector.shape_cast %33 : vector<1x128xf32> to vector<1x1x128xf32>
    tpu.vector_store %arg6[%c0_34, %c0_35, %c0_36], %41 {strides = array<i32>} : memref<1x2x128xf32, #tpu.memory_space<vmem>>, vector<1x1x128xf32>,
    %c0_37 = arith.constant 0 : index
    %c1_38 = arith.constant 1 : index
    %c0_39 = arith.constant 0 : index
    %42 = vector.load %arg6[%c0_37, %c1_38, %c0_39] : memref<1x2x128xf32, #tpu.memory_space<vmem>>, vector<1x1x128xf32>
    %43 = vector.shape_cast %42 : vector<1x1x128xf32> to vector<1x128xf32>
    %44 = vector.shape_cast %38 : vector<1x128xf32> to vector<1x1x128xf32>
    tpu.vector_store %arg6[%c0_37, %c1_38, %c0_39], %44 {strides = array<i32>} : memref<1x2x128xf32, #tpu.memory_space<vmem>>, vector<1x1x128xf32>,
    return
  }
  func.func @transform_0(%arg0: i32) -> (i32, i32, i32) {
    %c0_i32 = arith.constant 0 : i32
    %c0_i32_0 = arith.constant 0 : i32
    %c0_i32_1 = arith.constant 0 : i32
    return %arg0, %c0_i32, %c0_i32_0 : i32, i32, i32
  }
  func.func @transform_1(%arg0: i32) -> (i32, i32) {
    %c0_i32 = arith.constant 0 : i32
    %c0_i32_0 = arith.constant 0 : i32
    %c0_i32_1 = arith.constant 0 : i32
    return %c0_i32, %c0_i32_0 : i32, i32
  }
  func.func @transform_2(%arg0: i32) -> (i32, i32) {
    %c0_i32 = arith.constant 0 : i32
    %c0_i32_0 = arith.constant 0 : i32
    %c0_i32_1 = arith.constant 0 : i32
    return %c0_i32, %c0_i32_0 : i32, i32
  }
  func.func @transform_3(%arg0: i32) -> (i32, i32, i32) {
    %c0_i32 = arith.constant 0 : i32
    %c0_i32_0 = arith.constant 0 : i32
    %c0_i32_1 = arith.constant 0 : i32
    %c0_i32_2 = arith.constant 0 : i32
    return %c0_i32, %c0_i32_0, %c0_i32_1 : i32, i32, i32
  }
  func.func @transform_4(%arg0: i32) -> (i32, i32, i32) {
    %c0_i32 = arith.constant 0 : i32
    %c0_i32_0 = arith.constant 0 : i32
    %c0_i32_1 = arith.constant 0 : i32
    return %arg0, %c0_i32, %c0_i32_0 : i32, i32, i32
  }
  func.func @transform_5(%arg0: i32) -> (i32, i32, i32) {
    %c0_i32 = arith.constant 0 : i32
    %c0_i32_0 = arith.constant 0 : i32
    %c0_i32_1 = arith.constant 0 : i32
    return %arg0, %c0_i32, %c0_i32_0 : i32, i32, i32
  }
}

module attributes {stable_mosaic.version = 11 : i64} {
  func.func @_conv_bn_stats_kernel(%arg0: i32, %arg1: memref<1x16x128xf32, #tpu.memory_space<vmem>>, %arg2: memref<1x128xf32, #tpu.memory_space<vmem>>, %arg3: memref<1x128xf32, #tpu.memory_space<vmem>>, %arg4: memref<3x128x128xf32, #tpu.memory_space<vmem>>, %arg5: memref<1x16x128xf32, #tpu.memory_space<vmem>>, %arg6: memref<1x2x128xf32, #tpu.memory_space<vmem>>, %arg7: memref<18x128xf32, #tpu.memory_space<vmem>>) attributes {dimension_semantics = [#tpu.dimension_semantics<parallel>], iteration_bounds = array<i64: 2>, scalar_prefetch = 0 : i64, scratch_operands = 1 : i64, tpu.core_type = #tpu.core_type<tc>, window_params = [{transform_indices = @transform_0, window_bounds = array<i64: 1, 16, 128>}, {pipeline_mode = #tpu.pipeline_mode<synchronous>, transform_indices = @transform_1, window_bounds = array<i64: 1, 128>}, {pipeline_mode = #tpu.pipeline_mode<synchronous>, transform_indices = @transform_2, window_bounds = array<i64: 1, 128>}, {pipeline_mode = #tpu.pipeline_mode<synchronous>, transform_indices = @transform_3, window_bounds = array<i64: 3, 128, 128>}, {transform_indices = @transform_4, window_bounds = array<i64: 1, 16, 128>}, {transform_indices = @transform_5, window_bounds = array<i64: 1, 2, 128>}]} {
    %c0 = arith.constant 0 : index
    %c0_0 = arith.constant 0 : index
    %c0_1 = arith.constant 0 : index
    %0 = vector.load %arg1[%c0, %c0_0, %c0_1] : memref<1x16x128xf32, #tpu.memory_space<vmem>>, vector<1x16x128xf32>
    %1 = vector.shape_cast %0 : vector<1x16x128xf32> to vector<16x128xf32>
    %c0_2 = arith.constant 0 : index
    %c0_3 = arith.constant 0 : index
    %2 = vector.load %arg2[%c0_2, %c0_3] : memref<1x128xf32, #tpu.memory_space<vmem>>, vector<1x128xf32>
    %3 = vector.broadcast %2 : vector<1x128xf32> to vector<16x128xf32>
    %4 = arith.mulf %1, %3 : vector<16x128xf32>
    %c0_4 = arith.constant 0 : index
    %c0_5 = arith.constant 0 : index
    %5 = vector.load %arg3[%c0_4, %c0_5] : memref<1x128xf32, #tpu.memory_space<vmem>>, vector<1x128xf32>
    %6 = vector.broadcast %5 : vector<1x128xf32> to vector<16x128xf32>
    %7 = arith.addf %4, %6 : vector<16x128xf32>
    %cst = arith.constant 0.000000e+00 : f32
    %8 = vector.broadcast %cst : f32 to vector<16x128xf32>
    %9 = arith.maximumf %7, %8 : vector<16x128xf32>
    %cst_6 = arith.constant 0.000000e+00 : f32
    %10 = vector.broadcast %cst_6 : f32 to vector<1x128xf32>
    %c0_7 = arith.constant 0 : index
    %c0_8 = arith.constant 0 : index
    %11 = vector.load %arg7[%c0_7, %c0_8] : memref<18x128xf32, #tpu.memory_space<vmem>>, vector<1x128xf32>
    tpu.vector_store %arg7[%c0_7, %c0_8], %10 {strides = array<i32>} : memref<18x128xf32, #tpu.memory_space<vmem>>, vector<1x128xf32>,
    %cst_9 = arith.constant 0.000000e+00 : f32
    %12 = vector.broadcast %cst_9 : f32 to vector<1x128xf32>
    %c17 = arith.constant 17 : index
    %c0_10 = arith.constant 0 : index
    %13 = vector.load %arg7[%c17, %c0_10] : memref<18x128xf32, #tpu.memory_space<vmem>>, vector<1x128xf32>
    tpu.vector_store %arg7[%c17, %c0_10], %12 {strides = array<i32>} : memref<18x128xf32, #tpu.memory_space<vmem>>, vector<1x128xf32>,
    %c1 = arith.constant 1 : index
    %c0_11 = arith.constant 0 : index
    %14 = vector.load %arg7[%c1, %c0_11] : memref<18x128xf32, #tpu.memory_space<vmem>>, vector<16x128xf32>
    tpu.vector_store %arg7[%c1, %c0_11], %9 {strides = array<i32>} : memref<18x128xf32, #tpu.memory_space<vmem>>, vector<16x128xf32>,
    %c0_12 = arith.constant 0 : index
    %c0_13 = arith.constant 0 : index
    %15 = vector.load %arg7[%c0_12, %c0_13] : memref<18x128xf32, #tpu.memory_space<vmem>>, vector<16x128xf32>
    %c0_14 = arith.constant 0 : index
    %c0_15 = arith.constant 0 : index
    %c0_16 = arith.constant 0 : index
    %16 = vector.load %arg4[%c0_14, %c0_15, %c0_16] : memref<3x128x128xf32, #tpu.memory_space<vmem>>, vector<1x128x128xf32>
    %17 = vector.shape_cast %16 : vector<1x128x128xf32> to vector<128x128xf32>
    %cst_17 = arith.constant dense<0.000000e+00> : vector<16x128xf32>
    %18 = tpu.matmul %15, %17, %cst_17 {dimension_numbers = #tpu.dot_dimension_numbers<[1], [0], [0], [1], [0, 0, 1, 1], [], []>} : vector<16x128xf32>, vector<128x128xf32>, vector<16x128xf32> -> vector<16x128xf32>
    %c1_18 = arith.constant 1 : index
    %c0_19 = arith.constant 0 : index
    %19 = vector.load %arg7[%c1_18, %c0_19] : memref<18x128xf32, #tpu.memory_space<vmem>>, vector<16x128xf32>
    %c1_20 = arith.constant 1 : index
    %c0_21 = arith.constant 0 : index
    %c0_22 = arith.constant 0 : index
    %20 = vector.load %arg4[%c1_20, %c0_21, %c0_22] : memref<3x128x128xf32, #tpu.memory_space<vmem>>, vector<1x128x128xf32>
    %21 = vector.shape_cast %20 : vector<1x128x128xf32> to vector<128x128xf32>
    %cst_23 = arith.constant dense<0.000000e+00> : vector<16x128xf32>
    %22 = tpu.matmul %19, %21, %cst_23 {dimension_numbers = #tpu.dot_dimension_numbers<[1], [0], [0], [1], [0, 0, 1, 1], [], []>} : vector<16x128xf32>, vector<128x128xf32>, vector<16x128xf32> -> vector<16x128xf32>
    %23 = arith.addf %18, %22 : vector<16x128xf32>
    %c2 = arith.constant 2 : index
    %c0_24 = arith.constant 0 : index
    %24 = vector.load %arg7[%c2, %c0_24] : memref<18x128xf32, #tpu.memory_space<vmem>>, vector<16x128xf32>
    %c2_25 = arith.constant 2 : index
    %c0_26 = arith.constant 0 : index
    %c0_27 = arith.constant 0 : index
    %25 = vector.load %arg4[%c2_25, %c0_26, %c0_27] : memref<3x128x128xf32, #tpu.memory_space<vmem>>, vector<1x128x128xf32>
    %26 = vector.shape_cast %25 : vector<1x128x128xf32> to vector<128x128xf32>
    %cst_28 = arith.constant dense<0.000000e+00> : vector<16x128xf32>
    %27 = tpu.matmul %24, %26, %cst_28 {dimension_numbers = #tpu.dot_dimension_numbers<[1], [0], [0], [1], [0, 0, 1, 1], [], []>} : vector<16x128xf32>, vector<128x128xf32>, vector<16x128xf32> -> vector<16x128xf32>
    %28 = arith.addf %23, %27 : vector<16x128xf32>
    %c0_29 = arith.constant 0 : index
    %c0_30 = arith.constant 0 : index
    %c0_31 = arith.constant 0 : index
    %29 = vector.load %arg5[%c0_29, %c0_30, %c0_31] : memref<1x16x128xf32, #tpu.memory_space<vmem>>, vector<1x16x128xf32>
    %30 = vector.shape_cast %29 : vector<1x16x128xf32> to vector<16x128xf32>
    %31 = vector.shape_cast %28 : vector<16x128xf32> to vector<1x16x128xf32>
    tpu.vector_store %arg5[%c0_29, %c0_30, %c0_31], %31 {strides = array<i32>} : memref<1x16x128xf32, #tpu.memory_space<vmem>>, vector<1x16x128xf32>,
    %cst_32 = arith.constant dense<0.000000e+00> : vector<128xf32>
    %32 = vector.multi_reduction <add>, %28, %cst_32 [0] : vector<16x128xf32> to vector<128xf32>
    %33 = vector.shape_cast %32 : vector<128xf32> to vector<1x128xf32>
    %cst_33 = arith.constant 6.250000e-02 : f32
    %34 = vector.broadcast %cst_33 : f32 to vector<1x128xf32>
    %35 = arith.mulf %33, %34 : vector<1x128xf32>
    %36 = vector.broadcast %35 : vector<1x128xf32> to vector<16x128xf32>
    %37 = arith.subf %28, %36 : vector<16x128xf32>
    %38 = arith.mulf %37, %37 : vector<16x128xf32>
    %cst_34 = arith.constant dense<0.000000e+00> : vector<128xf32>
    %39 = vector.multi_reduction <add>, %38, %cst_34 [0] : vector<16x128xf32> to vector<128xf32>
    %40 = vector.shape_cast %39 : vector<128xf32> to vector<1x128xf32>
    %c0_35 = arith.constant 0 : index
    %c0_36 = arith.constant 0 : index
    %c0_37 = arith.constant 0 : index
    %41 = vector.load %arg6[%c0_35, %c0_36, %c0_37] : memref<1x2x128xf32, #tpu.memory_space<vmem>>, vector<1x1x128xf32>
    %42 = vector.shape_cast %41 : vector<1x1x128xf32> to vector<1x128xf32>
    %43 = vector.shape_cast %35 : vector<1x128xf32> to vector<1x1x128xf32>
    tpu.vector_store %arg6[%c0_35, %c0_36, %c0_37], %43 {strides = array<i32>} : memref<1x2x128xf32, #tpu.memory_space<vmem>>, vector<1x1x128xf32>,
    %c0_38 = arith.constant 0 : index
    %c1_39 = arith.constant 1 : index
    %c0_40 = arith.constant 0 : index
    %44 = vector.load %arg6[%c0_38, %c1_39, %c0_40] : memref<1x2x128xf32, #tpu.memory_space<vmem>>, vector<1x1x128xf32>
    %45 = vector.shape_cast %44 : vector<1x1x128xf32> to vector<1x128xf32>
    %46 = vector.shape_cast %40 : vector<1x128xf32> to vector<1x1x128xf32>
    tpu.vector_store %arg6[%c0_38, %c1_39, %c0_40], %46 {strides = array<i32>} : memref<1x2x128xf32, #tpu.memory_space<vmem>>, vector<1x1x128xf32>,
    return
  }
  func.func @transform_0(%arg0: i32) -> (i32, i32, i32) {
    %c0_i32 = arith.constant 0 : i32
    %c0_i32_0 = arith.constant 0 : i32
    %c0_i32_1 = arith.constant 0 : i32
    return %arg0, %c0_i32, %c0_i32_0 : i32, i32, i32
  }
  func.func @transform_1(%arg0: i32) -> (i32, i32) {
    %c0_i32 = arith.constant 0 : i32
    %c0_i32_0 = arith.constant 0 : i32
    %c0_i32_1 = arith.constant 0 : i32
    return %c0_i32, %c0_i32_0 : i32, i32
  }
  func.func @transform_2(%arg0: i32) -> (i32, i32) {
    %c0_i32 = arith.constant 0 : i32
    %c0_i32_0 = arith.constant 0 : i32
    %c0_i32_1 = arith.constant 0 : i32
    return %c0_i32, %c0_i32_0 : i32, i32
  }
  func.func @transform_3(%arg0: i32) -> (i32, i32, i32) {
    %c0_i32 = arith.constant 0 : i32
    %c0_i32_0 = arith.constant 0 : i32
    %c0_i32_1 = arith.constant 0 : i32
    %c0_i32_2 = arith.constant 0 : i32
    return %c0_i32, %c0_i32_0, %c0_i32_1 : i32, i32, i32
  }
  func.func @transform_4(%arg0: i32) -> (i32, i32, i32) {
    %c0_i32 = arith.constant 0 : i32
    %c0_i32_0 = arith.constant 0 : i32
    %c0_i32_1 = arith.constant 0 : i32
    return %arg0, %c0_i32, %c0_i32_0 : i32, i32, i32
  }
  func.func @transform_5(%arg0: i32) -> (i32, i32, i32) {
    %c0_i32 = arith.constant 0 : i32
    %c0_i32_0 = arith.constant 0 : i32
    %c0_i32_1 = arith.constant 0 : i32
    return %arg0, %c0_i32, %c0_i32_0 : i32, i32, i32
  }
}

module attributes {stable_mosaic.version = 11 : i64} {
  func.func @_bn_add_relu_kernel(%arg0: i32, %arg1: memref<1x16x128xf32, #tpu.memory_space<vmem>>, %arg2: memref<1x16x128xf32, #tpu.memory_space<vmem>>, %arg3: memref<1x128xf32, #tpu.memory_space<vmem>>, %arg4: memref<1x128xf32, #tpu.memory_space<vmem>>, %arg5: memref<1x16x128xf32, #tpu.memory_space<vmem>>) attributes {dimension_semantics = [#tpu.dimension_semantics<parallel>], iteration_bounds = array<i64: 2>, scalar_prefetch = 0 : i64, scratch_operands = 0 : i64, tpu.core_type = #tpu.core_type<tc>, window_params = [{transform_indices = @transform_0, window_bounds = array<i64: 1, 16, 128>}, {transform_indices = @transform_1, window_bounds = array<i64: 1, 16, 128>}, {pipeline_mode = #tpu.pipeline_mode<synchronous>, transform_indices = @transform_2, window_bounds = array<i64: 1, 128>}, {pipeline_mode = #tpu.pipeline_mode<synchronous>, transform_indices = @transform_3, window_bounds = array<i64: 1, 128>}, {transform_indices = @transform_4, window_bounds = array<i64: 1, 16, 128>}]} {
    %c0 = arith.constant 0 : index
    %c0_0 = arith.constant 0 : index
    %c0_1 = arith.constant 0 : index
    %0 = vector.load %arg1[%c0, %c0_0, %c0_1] : memref<1x16x128xf32, #tpu.memory_space<vmem>>, vector<1x16x128xf32>
    %1 = vector.shape_cast %0 : vector<1x16x128xf32> to vector<16x128xf32>
    %c0_2 = arith.constant 0 : index
    %c0_3 = arith.constant 0 : index
    %2 = vector.load %arg3[%c0_2, %c0_3] : memref<1x128xf32, #tpu.memory_space<vmem>>, vector<1x128xf32>
    %3 = vector.broadcast %2 : vector<1x128xf32> to vector<16x128xf32>
    %4 = arith.mulf %1, %3 : vector<16x128xf32>
    %c0_4 = arith.constant 0 : index
    %c0_5 = arith.constant 0 : index
    %5 = vector.load %arg4[%c0_4, %c0_5] : memref<1x128xf32, #tpu.memory_space<vmem>>, vector<1x128xf32>
    %6 = vector.broadcast %5 : vector<1x128xf32> to vector<16x128xf32>
    %7 = arith.addf %4, %6 : vector<16x128xf32>
    %c0_6 = arith.constant 0 : index
    %c0_7 = arith.constant 0 : index
    %c0_8 = arith.constant 0 : index
    %8 = vector.load %arg2[%c0_6, %c0_7, %c0_8] : memref<1x16x128xf32, #tpu.memory_space<vmem>>, vector<1x16x128xf32>
    %9 = vector.shape_cast %8 : vector<1x16x128xf32> to vector<16x128xf32>
    %10 = arith.addf %7, %9 : vector<16x128xf32>
    %cst = arith.constant 0.000000e+00 : f32
    %11 = vector.broadcast %cst : f32 to vector<16x128xf32>
    %12 = arith.maximumf %10, %11 : vector<16x128xf32>
    %c0_9 = arith.constant 0 : index
    %c0_10 = arith.constant 0 : index
    %c0_11 = arith.constant 0 : index
    %13 = vector.load %arg5[%c0_9, %c0_10, %c0_11] : memref<1x16x128xf32, #tpu.memory_space<vmem>>, vector<1x16x128xf32>
    %14 = vector.shape_cast %13 : vector<1x16x128xf32> to vector<16x128xf32>
    %15 = vector.shape_cast %12 : vector<16x128xf32> to vector<1x16x128xf32>
    tpu.vector_store %arg5[%c0_9, %c0_10, %c0_11], %15 {strides = array<i32>} : memref<1x16x128xf32, #tpu.memory_space<vmem>>, vector<1x16x128xf32>,
    return
  }
  func.func @transform_0(%arg0: i32) -> (i32, i32, i32) {
    %c0_i32 = arith.constant 0 : i32
    %c0_i32_0 = arith.constant 0 : i32
    %c0_i32_1 = arith.constant 0 : i32
    return %arg0, %c0_i32, %c0_i32_0 : i32, i32, i32
  }
  func.func @transform_1(%arg0: i32) -> (i32, i32, i32) {
    %c0_i32 = arith.constant 0 : i32
    %c0_i32_0 = arith.constant 0 : i32
    %c0_i32_1 = arith.constant 0 : i32
    return %arg0, %c0_i32, %c0_i32_0 : i32, i32, i32
  }
  func.func @transform_2(%arg0: i32) -> (i32, i32) {
    %c0_i32 = arith.constant 0 : i32
    %c0_i32_0 = arith.constant 0 : i32
    %c0_i32_1 = arith.constant 0 : i32
    return %c0_i32, %c0_i32_0 : i32, i32
  }
  func.func @transform_3(%arg0: i32) -> (i32, i32) {
    %c0_i32 = arith.constant 0 : i32
    %c0_i32_0 = arith.constant 0 : i32
    %c0_i32_1 = arith.constant 0 : i32
    return %c0_i32, %c0_i32_0 : i32, i32
  }
  func.func @transform_4(%arg0: i32) -> (i32, i32, i32) {
    %c0_i32 = arith.constant 0 : i32
    %c0_i32_0 = arith.constant 0 : i32
    %c0_i32_1 = arith.constant 0 : i32
    return %arg0, %c0_i32, %c0_i32_0 : i32, i32, i32
  }
}

</mosaic_0001>

<llo_original>
// kernel: squeeze.40
$region0: #{squeeze.40}
  %s0 = inlined_call_operand.vmem [shape: f32[2,128], index: 0, kind: input, shape index: {}]
  %s1 = inlined_call_operand.vmem [shape: f32[2,16,8], index: 1, kind: output, shape index: {}]
  $region1: #{squeeze.40} parent=0
    #allocation0 [shape = 'u8[4096]{0}', space=vmem, size = 0x1000, scoped, tag = 'scoped mem for input reshape']
    %s3 = sshllo.u32 0, 2
    %v4 = vld [vmem:[%s0] sm:%s3]
    %5 = vst [vmem:[#allocation0] sm:%s3] %v4
    %v6 = vld [vmem:[#allocation0] sm:$0x3]
    %vm7 = vcmask 64512
    %8 = vst.msk [vmem:[%s1] ss:$16 sm:$0x3] %vm7, %v6
    %v9 = vld [vmem:[#allocation0] sm:$0x3]
    %10 = vrot.lane.b32.xlu0 %v9, 120
    %v11 = vpop.permute.xlu0 %10
    %vm12 = vcmask 64512
    %s13 = scalar_lea.vmem %s1, 1
    %14 = vst.msk [vmem:[%s13] ss:$16 sm:$0x3] %vm12, %v11
    %v15 = vld [vmem:[#allocation0] sm:$0x3]
    %16 = vrot.lane.b32.xlu0 %v15, 112
    %v17 = vpop.permute.xlu0 %16
    %vm18 = vcmask 64512
    %s19 = scalar_lea.vmem %s1, 2
    %20 = vst.msk [vmem:[%s19] ss:$16 sm:$0x3] %vm18, %v17
    %v21 = vld [vmem:[#allocation0] sm:$0x3]
    %22 = vrot.lane.b32.xlu0 %v21, 104
    %v23 = vpop.permute.xlu0 %22
    %vm24 = vcmask 64512
    %s25 = scalar_lea.vmem %s1, 3
    %26 = vst.msk [vmem:[%s25] ss:$16 sm:$0x3] %vm24, %v23
    %v27 = vld [vmem:[#allocation0] sm:$0x3]
    %28 = vrot.lane.b32.xlu0 %v27, 96
    %v29 = vpop.permute.xlu0 %28
    %vm30 = vcmask 64512
    %s31 = scalar_lea.vmem %s1, 4
    %32 = vst.msk [vmem:[%s31] ss:$16 sm:$0x3] %vm30, %v29
    %v33 = vld [vmem:[#allocation0] sm:$0x3]
    %34 = vrot.lane.b32.xlu0 %v33, 88
    %v35 = vpop.permute.xlu0 %34
    %vm36 = vcmask 64512
    %s37 = scalar_lea.vmem %s1, 5
    %38 = vst.msk [vmem:[%s37] ss:$16 sm:$0x3] %vm36, %v35
    %v39 = vld [vmem:[#allocation0] sm:$0x3]
    %40 = vrot.lane.b32.xlu0 %v39, 80
    %v41 = vpop.permute.xlu0 %40
    %vm42 = vcmask 64512
    %s43 = scalar_lea.vmem %s1, 6
    %44 = vst.msk [vmem:[%s43] ss:$16 sm:$0x3] %vm42, %v41
    %v45 = vld [vmem:[#allocation0] sm:$0x3]
    %46 = vrot.lane.b32.xlu0 %v45, 72
    %v47 = vpop.permute.xlu0 %46
    %vm48 = vcmask 64512
    %s49 = scalar_lea.vmem %s1, 7
    %50 = vst.msk [vmem:[%s49] ss:$16 sm:$0x3] %vm48, %v47
    %v51 = vld [vmem:[#allocation0] sm:$0x3]
    %52 = vrot.lane.b32.xlu0 %v51, 64
    %v53 = vpop.permute.xlu0 %52
    %vm54 = vcmask 64512
    %s55 = scalar_lea.vmem %s1, 8
    %56 = vst.msk [vmem:[%s55] ss:$16 sm:$0x3] %vm54, %v53
    %v57 = vld [vmem:[#allocation0] sm:$0x3]
    %58 = vrot.lane.b32.xlu0 %v57, 56
    %v59 = vpop.permute.xlu0 %58
    %vm60 = vcmask 64512
    %s61 = scalar_lea.vmem %s1, 9
    %62 = vst.msk [vmem:[%s61] ss:$16 sm:$0x3] %vm60, %v59
    %v63 = vld [vmem:[#allocation0] sm:$0x3]
    %64 = vrot.lane.b32.xlu0 %v63, 48
    %v65 = vpop.permute.xlu0 %64
    %vm66 = vcmask 64512
    %s67 = scalar_lea.vmem %s1, 10
    %68 = vst.msk [vmem:[%s67] ss:$16 sm:$0x3] %vm66, %v65
    %v69 = vld [vmem:[#allocation0] sm:$0x3]
    %70 = vrot.lane.b32.xlu0 %v69, 40
    %v71 = vpop.permute.xlu0 %70
    %vm72 = vcmask 64512
    %s73 = scalar_lea.vmem %s1, 11
    %74 = vst.msk [vmem:[%s73] ss:$16 sm:$0x3] %vm72, %v71
    %v75 = vld [vmem:[#allocation0] sm:$0x3]
    %76 = vrot.lane.b32.xlu0 %v75, 32
    %v77 = vpop.permute.xlu0 %76
    %vm78 = vcmask 64512
    %s79 = scalar_lea.vmem %s1, 12
    %80 = vst.msk [vmem:[%s79] ss:$16 sm:$0x3] %vm78, %v77
    %v81 = vld [vmem:[#allocation0] sm:$0x3]
    %82 = vrot.lane.b32.xlu0 %v81, 24
    %v83 = vpop.permute.xlu0 %82
    %vm84 = vcmask 64512
    %s85 = scalar_lea.vmem %s1, 13
    %86 = vst.msk [vmem:[%s85] ss:$16 sm:$0x3] %vm84, %v83
    %v87 = vld [vmem:[#allocation0] sm:$0x3]
    %88 = vrot.lane.b32.xlu0 %v87, 16
    %v89 = vpop.permute.xlu0 %88
    %vm90 = vcmask 64512
    %s91 = scalar_lea.vmem %s1, 14
    %92 = vst.msk [vmem:[%s91] ss:$16 sm:$0x3] %vm90, %v89
    %v93 = vld [vmem:[#allocation0] sm:$0x3]
    %94 = vrot.lane.b32.xlu0 %v93, 8
    %v95 = vpop.permute.xlu0 %94
    %vm96 = vcmask 64512
    %s97 = scalar_lea.vmem %s1, 15
    %98 = vst.msk [vmem:[%s97] ss:$16 sm:$0x3] %vm96, %v95

// kernel: tile.23
$region0: #{tile.23}
  #allocation0 [shape = 's32[1]{0}', space=sflag, size = 0x4, scoped, tag = 'scoped memory for tile.23']
  %s0 = inlined_call_operand.vmem [shape: f32[8], index: 0, kind: input, shape index: {}]
  %s1 = inlined_call_operand.vmem [shape: f32[16,8], index: 1, kind: output, shape index: {}]
  // Predicated region
  $region2: #{tile.23} parent=0 // pred_check
    _
  $region3: #{tile.23} parent=0 // pred_check_branch
    %3 = sbr.rel (0) target = $region5
  $region4: #{tile.23} parent=0 // pred_region
    _
  $region5: #{tile.23} parent=0 // pred_fallthru
    _
  %v4 = vld [vmem:[%s0] ss:$0 sm:$0xff]
  %5 = vst [vmem:[%s1] sm:$0xff] %v4
  %s6 = scalar_lea.vmem %s1, 8
  %7 = vst [vmem:[%s6] sm:$0xff] %v4

// kernel: tile.24
$region0: #{tile.24}
  %s0 = inlined_call_operand.vmem [shape: f32[16,8], index: 0, kind: input, shape index: {}]
  %s1 = inlined_call_operand.vmem [shape: f32[1,128], index: 1, kind: output, shape index: {}]
  $region1: #{tile.24} parent=0
    #allocation0 [shape = 'u8[4096]{0}', space=vmem, size = 0x1000, scoped, tag = 'scoped mem for output reshape']
    %v2 = vld [vmem:[%s0] sm:$0x1]
    %vm3 = vcmask 64512
    %4 = vst.msk [vmem:[#allocation0] sm:$0x1] %vm3, %v2
    %s5 = scalar_lea.vmem %s0, 15
    %v6 = vld [vmem:[%s5] sm:$0x1]
    %7 = vrot.lane.b32.xlu0 %v6, 120
    %v8 = vpop.permute.xlu0 %7
    %vm9 = vcmask 1048512
    %10 = vst.msk [vmem:[#allocation0] sm:$0x1] %vm9, %v8
    %s11 = scalar_lea.vmem %s0, 14
    %v12 = vld [vmem:[%s11] sm:$0x1]
    %13 = vrot.lane.b32.xlu0 %v12, 112
    %v14 = vpop.permute.xlu0 %13
    %vm15 = vcmask 982912
    %16 = vst.msk [vmem:[#allocation0] sm:$0x1] %vm15, %v14
    %s17 = scalar_lea.vmem %s0, 13
    %v18 = vld [vmem:[%s17] sm:$0x1]
    %19 = vrot.lane.b32.xlu0 %v18, 104
    %v20 = vpop.permute.xlu0 %19
    %vm21 = vcmask 917312
    %22 = vst.msk [vmem:[#allocation0] sm:$0x1] %vm21, %v20
    %s23 = scalar_lea.vmem %s0, 12
    %v24 = vld [vmem:[%s23] sm:$0x1]
    %25 = vrot.lane.b32.xlu0 %v24, 96
    %v26 = vpop.permute.xlu0 %25
    %vm27 = vcmask 851712
    %28 = vst.msk [vmem:[#allocation0] sm:$0x1] %vm27, %v26
    %s29 = scalar_lea.vmem %s0, 11
    %v30 = vld [vmem:[%s29] sm:$0x1]
    %31 = vrot.lane.b32.xlu0 %v30, 88
    %v32 = vpop.permute.xlu0 %31
    %vm33 = vcmask 786112
    %34 = vst.msk [vmem:[#allocation0] sm:$0x1] %vm33, %v32
    %s35 = scalar_lea.vmem %s0, 10
    %v36 = vld [vmem:[%s35] sm:$0x1]
    %37 = vrot.lane.b32.xlu0 %v36, 80
    %v38 = vpop.permute.xlu0 %37
    %vm39 = vcmask 720512
    %40 = vst.msk [vmem:[#allocation0] sm:$0x1] %vm39, %v38
    %s41 = scalar_lea.vmem %s0, 9
    %v42 = vld [vmem:[%s41] sm:$0x1]
    %43 = vrot.lane.b32.xlu0 %v42, 72
    %v44 = vpop.permute.xlu0 %43
    %vm45 = vcmask 654912
    %46 = vst.msk [vmem:[#allocation0] sm:$0x1] %vm45, %v44
    %s47 = scalar_lea.vmem %s0, 8
    %v48 = vld [vmem:[%s47] sm:$0x1]
    %49 = vrot.lane.b32.xlu0 %v48, 64
    %v50 = vpop.permute.xlu0 %49
    %vm51 = vcmask 589312
    %52 = vst.msk [vmem:[#allocation0] sm:$0x1] %vm51, %v50
    %s53 = scalar_lea.vmem %s0, 7
    %v54 = vld [vmem:[%s53] sm:$0x1]
    %55 = vrot.lane.b32.xlu0 %v54, 56
    %v56 = vpop.permute.xlu0 %55
    %vm57 = vcmask 523712
    %58 = vst.msk [vmem:[#allocation0] sm:$0x1] %vm57, %v56
    %s59 = scalar_lea.vmem %s0, 6
    %v60 = vld [vmem:[%s59] sm:$0x1]
    %61 = vrot.lane.b32.xlu0 %v60, 48
    %v62 = vpop.permute.xlu0 %61
    %vm63 = vcmask 458112
    %64 = vst.msk [vmem:[#allocation0] sm:$0x1] %vm63, %v62
    %s65 = scalar_lea.vmem %s0, 5
    %v66 = vld [vmem:[%s65] sm:$0x1]
    %67 = vrot.lane.b32.xlu0 %v66, 40
    %v68 = vpop.permute.xlu0 %67
    %vm69 = vcmask 392512
    %70 = vst.msk [vmem:[#allocation0] sm:$0x1] %vm69, %v68
    %s71 = scalar_lea.vmem %s0, 4
    %v72 = vld [vmem:[%s71] sm:$0x1]
    %73 = vrot.lane.b32.xlu0 %v72, 32
    %v74 = vpop.permute.xlu0 %73
    %vm75 = vcmask 326912
    %76 = vst.msk [vmem:[#allocation0] sm:$0x1] %vm75, %v74
    %s77 = scalar_lea.vmem %s0, 3
    %v78 = vld [vmem:[%s77] sm:$0x1]
    %79 = vrot.lane.b32.xlu0 %v78, 24
    %v80 = vpop.permute.xlu0 %79
    %vm81 = vcmask 261312
    %82 = vst.msk [vmem:[#allocation0] sm:$0x1] %vm81, %v80
    %s83 = scalar_lea.vmem %s0, 2
    %v84 = vld [vmem:[%s83] sm:$0x1]
    %85 = vrot.lane.b32.xlu0 %v84, 16
    %v86 = vpop.permute.xlu0 %85
    %vm87 = vcmask 195712
    %88 = vst.msk [vmem:[#allocation0] sm:$0x1] %vm87, %v86
    %s89 = scalar_lea.vmem %s0, 1
    %v90 = vld [vmem:[%s89] sm:$0x1]
    %91 = vrot.lane.b32.xlu0 %v90, 8
    %v92 = vpop.permute.xlu0 %91
    %vm93 = vcmask 130112
    %94 = vst.msk [vmem:[#allocation0] sm:$0x1] %vm93, %v92
    %s96 = sshllo.u32 0, 1
    %v98 = vld [vmem:[#allocation0] sm:%s96]
    %s99 = sshllo.u32 0, 1
    %100 = vst [vmem:[%s1] sm:%s99] %v98

// kernel: residual_block.3
$region0: #{residual_block.3}
  #allocation0 [shape = 'u32[]', space=smem, size = 0x4, offset = 0x4, fixed_abs, tag = 'smem constant byte address 0x4 - core index']
  #allocation1 [shape = 'u32[144,128]{1,0:T(1,128)}', space=vmem, size = 0x12000, scoped, tag = 'internal scratch']
  #allocation2 [shape = 'f32[18,128]{1,0:T(8,128)}', space=vmem, size = 0x3000, scoped, tag = 'scratch operand']
  %s0 = inlined_call_operand.vmem [shape: f32[2,16,128], index: 0, kind: input, shape index: {}]
  %s1 = inlined_call_operand.vmem [shape: f32[1,128], index: 1, kind: input, shape index: {}]
  %s2 = inlined_call_operand.vmem [shape: f32[1,128], index: 2, kind: input, shape index: {}]
  %s3 = inlined_call_operand.vmem [shape: f32[3,128,128], index: 3, kind: input, shape index: {}]
  %s4 = inlined_call_operand.vmem [shape: f32[2,16,128], index: 4, kind: output, shape index: {0}]
  %s5 = inlined_call_operand.vmem [shape: f32[2,2,128], index: 5, kind: output, shape index: {1}]
  %6 = xla_tuple %s4, %s5
  %s7 = sld [smem:[#allocation0]]
  $region57: #{residual_block.3} parent=0
    _
  %s9 = ssub.s32 1, %s7
  %s10 = scalar_select 0, %s9, %s7
  loop: start=0, step=1, limit=4
  $region2: #{residual_block.3} parent=0 // loop_pre_header
    _
  $region3: #{residual_block.3} parent=0 // loop_header
    %s12 = sphi 0, %s16
    %p13 = scmp.ge.s32.totalorder %s12, 4
    %s22 = sphi 0, %s24
    %s25 = sphi 0, %s22
    %s26 = sphi 0, %s25
    %s42 = sphi 0, %s26
    %s46 = sphi 0, %s46
    %s48 = sphi 0, %s46
    %s49 = sphi 0, %s48
    %s63 = sphi 0, %s49
    %s67 = sphi 0, %s67
    %s69 = sphi 0, %s67
    %s70 = sphi 0, %s69
    %s84 = sphi 0, %s70
    %s88 = sphi 0, %s88
    %s90 = sphi 0, %s88
    %s91 = sphi 0, %s90
    %s105 = sphi 0, %s91
    %s111 = sphi 0, %s113
    %s114 = sphi 0, %s111
    %s115 = sphi 0, %s114
    %s131 = sphi 0, %s115
    %s137 = sphi 0, %s139
    %s140 = sphi 0, %s137
    %s141 = sphi 0, %s140
    %s157 = sphi 0, %s141
  $region4: #{residual_block.3} parent=0 // loop_header_branch
    %15 = sbr.rel (%p13) target = $region8
  $region5: #{residual_block.3} parent=0 // loop_body
    %s17 = ssub.s32 %s12, 1
    %s18 = ssub.s32 %s12, 2
    %s19 = sadd.s32 %s12, 1
    %s20 = ssub.s32 %s12, %s19
    %p21 = scmp.eq.s32.totalorder %s20, 0
    %s23 = sadd.s32 %s22, 1
    %s24 = scalar_select %p21, %s22, %s23
    %p27 = pneg %p21
    %p28 = scmp.eq.s32.totalorder %s12, 1
    %p29 = por %p27, %p28
    %p30 = scmp.ne.s32.totalorder %s22, %s25
    %p31 = scmp.eq.s32.totalorder %s12, 0
    %p32 = por %p30, %p31
    %p33 = scmp.ne.s32.totalorder %s22, %s25
    %p34 = scmp.eq.s32.totalorder %s17, 1
    %p35 = por %p33, %p34
    %p36 = scmp.ne.s32.totalorder %s25, %s26
    %p37 = scmp.eq.s32.totalorder %s17, 0
    %p38 = por %p36, %p37
    %p39 = scmp.ne.s32.totalorder %s25, %s26
    %p40 = scmp.eq.s32.totalorder %s18, 1
    %p41 = por %p39, %p40
    %p43 = scmp.ne.s32.totalorder %s26, %s42
    %p44 = scmp.eq.s32.totalorder %s18, 0
    %p45 = por %p43, %p44
    %s47 = sadd.s32 %s46, 1
    %p50 = scmp.eq.s32.totalorder %s12, 1
    %p51 = scmp.ne.s32.totalorder %s46, %s48
    %p52 = scmp.eq.s32.totalorder %s12, 0
    %p53 = por %p51, %p52
    %p54 = scmp.ne.s32.totalorder %s46, %s48
    %p55 = scmp.eq.s32.totalorder %s17, 1
    %p56 = por %p54, %p55
    %p57 = scmp.ne.s32.totalorder %s48, %s49
    %p58 = scmp.eq.s32.totalorder %s17, 0
    %p59 = por %p57, %p58
    %p60 = scmp.ne.s32.totalorder %s48, %s49
    %p61 = scmp.eq.s32.totalorder %s18, 1
    %p62 = por %p60, %p61
    %p64 = scmp.ne.s32.totalorder %s49, %s63
    %p65 = scmp.eq.s32.totalorder %s18, 0
    %p66 = por %p64, %p65
    %s68 = sadd.s32 %s67, 1
    %p71 = scmp.eq.s32.totalorder %s12, 1
    %p72 = scmp.ne.s32.totalorder %s67, %s69
    %p73 = scmp.eq.s32.totalorder %s12, 0
    %p74 = por %p72, %p73
    %p75 = scmp.ne.s32.totalorder %s67, %s69
    %p76 = scmp.eq.s32.totalorder %s17, 1
    %p77 = por %p75, %p76
    %p78 = scmp.ne.s32.totalorder %s69, %s70
    %p79 = scmp.eq.s32.totalorder %s17, 0
    %p80 = por %p78, %p79
    %p81 = scmp.ne.s32.totalorder %s69, %s70
    %p82 = scmp.eq.s32.totalorder %s18, 1
    %p83 = por %p81, %p82
    %p85 = scmp.ne.s32.totalorder %s70, %s84
    %p86 = scmp.eq.s32.totalorder %s18, 0
    %p87 = por %p85, %p86
    %s89 = sadd.s32 %s88, 1
    %p92 = scmp.eq.s32.totalorder %s12, 1
    %p93 = scmp.ne.s32.totalorder %s88, %s90
    %p94 = scmp.eq.s32.totalorder %s12, 0
    %p95 = por %p93, %p94
    %p96 = scmp.ne.s32.totalorder %s88, %s90
    %p97 = scmp.eq.s32.totalorder %s17, 1
    %p98 = por %p96, %p97
    %p99 = scmp.ne.s32.totalorder %s90, %s91
    %p100 = scmp.eq.s32.totalorder %s17, 0
    %p101 = por %p99, %p100
    %p102 = scmp.ne.s32.totalorder %s90, %s91
    %p103 = scmp.eq.s32.totalorder %s18, 1
    %p104 = por %p102, %p103
    %p106 = scmp.ne.s32.totalorder %s91, %s105
    %p107 = scmp.eq.s32.totalorder %s18, 0
    %p108 = por %p106, %p107
    %s109 = ssub.s32 %s12, %s19
    %p110 = scmp.eq.s32.totalorder %s109, 0
    %s112 = sadd.s32 %s111, 1
    %s113 = scalar_select %p110, %s111, %s112
    %p116 = pneg %p110
    %p117 = scmp.eq.s32.totalorder %s12, 1
    %p118 = por %p116, %p117
    %p119 = scmp.ne.s32.totalorder %s111, %s114
    %p120 = scmp.eq.s32.totalorder %s12, 0
    %p121 = por %p119, %p120
    %p122 = scmp.ne.s32.totalorder %s111, %s114
    %p123 = scmp.eq.s32.totalorder %s17, 1
    %p124 = por %p122, %p123
    %p125 = scmp.ne.s32.totalorder %s114, %s115
    %p126 = scmp.eq.s32.totalorder %s17, 0
    %p127 = por %p125, %p126
    %p128 = scmp.ne.s32.totalorder %s114, %s115
    %p129 = scmp.eq.s32.totalorder %s18, 1
    %p130 = por %p128, %p129
    %p132 = scmp.ne.s32.totalorder %s115, %s131
    %p133 = scmp.eq.s32.totalorder %s18, 0
    %p134 = por %p132, %p133
    %s135 = ssub.s32 %s12, %s19
    %p136 = scmp.eq.s32.totalorder %s135, 0
    %s138 = sadd.s32 %s137, 1
    %s139 = scalar_select %p136, %s137, %s138
    %p142 = pneg %p136
    %p143 = scmp.eq.s32.totalorder %s12, 1
    %p144 = por %p142, %p143
    %p145 = scmp.ne.s32.totalorder %s137, %s140
    %p146 = scmp.eq.s32.totalorder %s12, 0
    %p147 = por %p145, %p146
    %p148 = scmp.ne.s32.totalorder %s137, %s140
    %p149 = scmp.eq.s32.totalorder %s17, 1
    %p150 = por %p148, %p149
    %p151 = scmp.ne.s32.totalorder %s140, %s141
    %p152 = scmp.eq.s32.totalorder %s17, 0
    %p153 = por %p151, %p152
    %p154 = scmp.ne.s32.totalorder %s140, %s141
    %p155 = scmp.eq.s32.totalorder %s18, 1
    %p156 = por %p154, %p155
    %p158 = scmp.ne.s32.totalorder %s141, %s157
    %p159 = scmp.eq.s32.totalorder %s18, 0
    %p160 = por %p158, %p159
    %p161 = scmp.le.s32.totalorder 1, %s12
    %p162 = scmp.lt.s32.totalorder %s12, 3
    %p163 = pnand %p161, %p162
    %p164 = pneg %p163
    // Predicated region
    $region9: #{residual_block.3} parent=5 // pred_check
      _
    $region10: #{residual_block.3} parent=5 // pred_check_branch
      %166 = sbr.rel (%p163) target = $region12
    $region11: #{residual_block.3} parent=5 // pred_region
      %s167 = ssub.s32 %s12, 1
      // Predicated region
      $region13: #{residual_block.3} parent=11 // pred_check
        %p168 = pneg %p59
      $region14: #{residual_block.3} parent=11 // pred_check_branch
        %170 = sbr.rel (%p168) target = $region16
      $region15: #{residual_block.3} parent=11 // pred_region
        _
      $region16: #{residual_block.3} parent=11 // pred_fallthru
        _
      // Predicated region
      $region17: #{residual_block.3} parent=11 // pred_check
        %p171 = pneg %p80
      $region18: #{residual_block.3} parent=11 // pred_check_branch
        %173 = sbr.rel (%p171) target = $region20
      $region19: #{residual_block.3} parent=11 // pred_region
        _
      $region20: #{residual_block.3} parent=11 // pred_fallthru
        _
      // Predicated region
      $region21: #{residual_block.3} parent=11 // pred_check
        %p174 = pneg %p101
      $region22: #{residual_block.3} parent=11 // pred_check_branch
        %176 = sbr.rel (%p174) target = $region24
      $region23: #{residual_block.3} parent=11 // pred_region
        _
      $region24: #{residual_block.3} parent=11 // pred_fallthru
        _
    $region12: #{residual_block.3} parent=5 // pred_fallthru
      _
    %p177 = scmp.lt.s32.totalorder %s12, 2
    // Predicated region
    $region25: #{residual_block.3} parent=5 // pred_check
      %p178 = pneg %p177
    $region26: #{residual_block.3} parent=5 // pred_check_branch
      %180 = sbr.rel (%p178) target = $region28
    $region27: #{residual_block.3} parent=5 // pred_region
      // Predicated region
      $region29: #{residual_block.3} parent=27 // pred_check
        %p181 = pneg %p32
      $region30: #{residual_block.3} parent=27 // pred_check_branch
        %183 = sbr.rel (%p181) target = $region32
      $region31: #{residual_block.3} parent=27 // pred_region
        %p184 = scmp.lt.s32.totalorder %s12, 1
        %s185 = scalar_select %p184, %s12, 1
        %s186 = smul.addr %s185, 2
        %s187 = smul.addr %s186, 8
        %s188 = scalar_lea.vmem %s0, %s187
      $region32: #{residual_block.3} parent=27 // pred_fallthru
        _
    $region28: #{residual_block.3} parent=5 // pred_fallthru
      _
    %p189 = scmp.le.s32.totalorder 1, %s12
    %p190 = scmp.lt.s32.totalorder %s12, 3
    %p191 = pnand %p189, %p190
    %p192 = pneg %p191
    // Predicated region
    $region33: #{residual_block.3} parent=5 // pred_check
      _
    $region34: #{residual_block.3} parent=5 // pred_check_branch
      %194 = sbr.rel (%p191) target = $region36
    $region35: #{residual_block.3} parent=5 // pred_region
      %s195 = ssub.s32 %s12, 1
      %p196 = scmp.lt.s32.totalorder %s17, 1
      %s197 = scalar_select %p196, %s17, 1
      %s198 = smul.addr %s197, 2
      %s199 = smul.addr %s198, 8
      %s200 = scalar_lea.vmem %s0, %s199
      %p201 = pneg %p38
      %p202 = pneg %p35
      %p203 = pneg %p59
      %p204 = pneg %p56
      %p205 = pneg %p80
      %p206 = pneg %p77
      %p207 = pneg %p101
      %p208 = pneg %p98
      %p209 = pneg %p127
      %p210 = pneg %p124
      %p211 = scmp.lt.s32.totalorder %s17, 1
      %s212 = scalar_select %p211, %s17, 1
      %s213 = smul.addr %s212, 2
      %s214 = smul.addr %s213, 8
      %s215 = scalar_lea.vmem %s4, %s214
      %p216 = pneg %p153
      %p217 = pneg %p150
      %p218 = scmp.lt.s32.totalorder %s17, 1
      %s219 = scalar_select %p218, %s17, 1
      %s220 = smul.addr %s219, 2
      %s221 = scalar_lea.vmem %s5, %s220
      %p222 = scmp.lt.s32.totalorder %s17, 1
      %s223 = scalar_select %p222, %s17, 1
      %s224 = smul.addr %s223, 2
      %s225 = smul.addr %s224, 8
      %s226 = scalar_lea.vmem %s0, %s225
      %p227 = scmp.lt.s32.totalorder %s17, 1
      %s228 = scalar_select %p227, %s17, 1
      %s229 = smul.addr %s228, 2
      %s230 = smul.addr %s229, 8
      %s231 = scalar_lea.vmem %s4, %s230
      %p232 = scmp.lt.s32.totalorder %s17, 1
      %s233 = scalar_select %p232, %s17, 1
      %s234 = smul.addr %s233, 2
      %s235 = scalar_lea.vmem %s5, %s234
      %v236 = vld [vmem:[%s226] sm:$0xff]
      %v237 = vld [vmem:[%s226 + $0x8] sm:$0xff]
      %v238 = vld [vmem:[%s1] sm:$0x1]
      %v240 = vlaneseq
      %v241 = vshrl.u32 %v240, 7
      %v242 = vsub.s32 0, %v241
      %v243 = vrot.slane %v238, %v242
      %v245 = vmul.f32 %v236, %v243
      %v246 = vmul.f32 %v237, %v243
      %v247 = vld [vmem:[%s2] sm:$0x1]
      %v249 = vlaneseq
      %v250 = vshrl.u32 %v249, 7
      %v251 = vsub.s32 0, %v250
      %v252 = vrot.slane %v247, %v251
      %v254 = vadd.f32 %v245, %v252
      %v255 = vadd.f32 %v246, %v252
      %256 = vst [vmem:[#allocation2] sm:$0x1] 0.0
      %257 = vst [vmem:[#allocation2 + $0x11] sm:$0x1] 0.0
      %258 = vst [vmem:[#allocation2 + $0x1] sm:$0xff] %v254
      %259 = vst [vmem:[#allocation2 + $0x9] sm:$0xff] %v255
      %v260 = vld [vmem:[#allocation2] sm:$0xff]
      %v261 = vld [vmem:[#allocation2 + $0x8] sm:$0xff]
      %v262 = vld [vmem:[%s3] sm:$0xff]
      %v263 = vld [vmem:[%s3 + $0x8] sm:$0xff]
      %v264 = vld [vmem:[%s3 + $0x10] sm:$0xff]
      %v265 = vld [vmem:[%s3 + $0x18] sm:$0xff]
      %v266 = vld [vmem:[%s3 + $0x20] sm:$0xff]
      %v267 = vld [vmem:[%s3 + $0x28] sm:$0xff]
      %v268 = vld [vmem:[%s3 + $0x30] sm:$0xff]
      %v269 = vld [vmem:[%s3 + $0x38] sm:$0xff]
      %v270 = vld [vmem:[%s3 + $0x40] sm:$0xff]
      %v271 = vld [vmem:[%s3 + $0x48] sm:$0xff]
      %v272 = vld [vmem:[%s3 + $0x50] sm:$0xff]
      %v273 = vld [vmem:[%s3 + $0x58] sm:$0xff]
      %v274 = vld [vmem:[%s3 + $0x60] sm:$0xff]
      %v275 = vld [vmem:[%s3 + $0x68] sm:$0xff]
      %v276 = vld [vmem:[%s3 + $0x70] sm:$0xff]
      %v277 = vld [vmem:[%s3 + $0x78] sm:$0xff]
      %v278 = vld [vmem:[#allocation2 + $0x1] sm:$0xff]
      %v279 = vld [vmem:[#allocation2 + $0x9] sm:$0xff]
      %s280 = scalar_lea.vmem %s3, 128
      %v281 = vld [vmem:[%s280] sm:$0xff]
      %v282 = vld [vmem:[%s280 + $0x8] sm:$0xff]
      %v283 = vld [vmem:[%s280 + $0x10] sm:$0xff]
      %v284 = vld [vmem:[%s280 + $0x18] sm:$0xff]
      %v285 = vld [vmem:[%s280 + $0x20] sm:$0xff]
      %v286 = vld [vmem:[%s280 + $0x28] sm:$0xff]
      %v287 = vld [vmem:[%s280 + $0x30] sm:$0xff]
      %v288 = vld [vmem:[%s280 + $0x38] sm:$0xff]
      %v289 = vld [vmem:[%s280 + $0x40] sm:$0xff]
      %v290 = vld [vmem:[%s280 + $0x48] sm:$0xff]
      %v291 = vld [vmem:[%s280 + $0x50] sm:$0xff]
      %v292 = vld [vmem:[%s280 + $0x58] sm:$0xff]
      %v293 = vld [vmem:[%s280 + $0x60] sm:$0xff]
      %v294 = vld [vmem:[%s280 + $0x68] sm:$0xff]
      %v295 = vld [vmem:[%s280 + $0x70] sm:$0xff]
      %v296 = vld [vmem:[%s280 + $0x78] sm:$0xff]
      %297 = vmatprep.subr.mxu0 0.0
      %298 = vmatpush1.msra.mxu0 %v281
      %299 = vmatprep.subr.mxu0 0.0
      %300 = vmatpush1.msra.mxu0 %v282
      %301 = vmatprep.subr.mxu0 0.0
      %302 = vmatpush1.msra.mxu0 %v283
      %303 = vmatprep.subr.mxu0 0.0
      %304 = vmatpush1.msra.mxu0 %v284
      %305 = vmatprep.subr.mxu0 0.0
      %306 = vmatpush1.msra.mxu0 %v285
      %307 = vmatprep.subr.mxu0 0.0
      %308 = vmatpush1.msra.mxu0 %v286
      %309 = vmatprep.subr.mxu0 0.0
      %310 = vmatpush1.msra.mxu0 %v287
      %311 = vmatprep.subr.mxu0 0.0
      %312 = vmatpush1.msra.mxu0 %v288
      %313 = vmatprep.subr.mxu0 0.0
      %314 = vmatpush1.msra.mxu0 %v289
      %315 = vmatprep.subr.mxu0 0.0
      %316 = vmatpush1.msra.mxu0 %v290
      %317 = vmatprep.subr.mxu0 0.0
      %318 = vmatpush1.msra.mxu0 %v291
      %319 = vmatprep.subr.mxu0 0.0
      %320 = vmatpush1.msra.mxu0 %v292
      %321 = vmatprep.subr.mxu0 0.0
      %322 = vmatpush1.msra.mxu0 %v293
      %323 = vmatprep.subr.mxu0 0.0
      %324 = vmatpush1.msra.mxu0 %v294
      %325 = vmatprep.subr.mxu0 0.0
      %326 = vmatpush1.msra.mxu0 %v295
      %327 = vmatprep.subr.mxu0 0.0
      %328 = vmatpush1.msra.mxu0 %v296
      %329 = vmatprep.subr.mxu0 0.0
      %330 = vmatpush1.msra.mxu0 0.0
      %331 = vmatprep.subr.mxu0 0.0
      %332 = vmatpush1.msra.mxu0 0.0
      %333 = vmatprep.subr.mxu0 0.0
      %334 = vmatpush1.msra.mxu0 0.0
      %335 = vmatprep.subr.mxu0 0.0
      %336 = vmatpush1.msra.mxu0 0.0
      %337 = vmatprep.subr.mxu0 0.0
      %338 = vmatpush1.msra.mxu0 0.0
      %339 = vmatprep.subr.mxu0 0.0
      %340 = vmatpush1.msra.mxu0 0.0
      %341 = vmatprep.subr.mxu0 0.0
      %342 = vmatpush1.msra.mxu0 0.0
      %343 = vmatprep.subr.mxu0 0.0
      %344 = vmatpush1.msra.mxu0 0.0
      %345 = vmatprep.subr.mxu0 0.0
      %346 = vmatpush1.msra.mxu0 0.0
      %347 = vmatprep.subr.mxu0 0.0
      %348 = vmatpush1.msra.mxu0 0.0
      %349 = vmatprep.subr.mxu0 0.0
      %350 = vmatpush1.msra.mxu0 0.0
      %351 = vmatprep.subr.mxu0 0.0
      %352 = vmatpush1.msra.mxu0 0.0
      %353 = vmatprep.subr.mxu0 0.0
      %354 = vmatpush1.msra.mxu0 0.0
      %355 = vmatprep.subr.mxu0 0.0
      %356 = vmatpush1.msra.mxu0 0.0
      %357 = vmatprep.subr.mxu0 0.0
      %358 = vmatpush1.msra.mxu0 0.0
      %359 = vmatprep.subr.mxu0 0.0
      %360 = vmatpush1.msra.mxu0 0.0
      %361 = vmatprep.mubr.f32.mxu0 0.0
      %362 = vmatmul.mubr.f32.gmra.mrb[0].mxu0 %v278
      %v363 = vpop.f32.mrb[0].mxu0
      %v364 = vadd.f32 0.0, %v363
      %v365 = vpop.f32.mrb[0].mxu0
      %366 = vmatprep.mubr.f32.mxu0 0.0
      %367 = vmatmul.mubr.f32.gmra.mrb[0].mxu0 %v279
      %v368 = vpop.f32.mrb[0].mxu0
      %v369 = vadd.f32 0.0, %v368
      %v370 = vpop.f32.mrb[0].mxu0
      %371 = vdwg.mxu0
      %372 = vmatprep.subr.mxu0 0.0
      %373 = vmatpush1.msra.mxu0 %v262
      %374 = vmatprep.subr.mxu0 0.0
      %375 = vmatpush1.msra.mxu0 %v263
      %376 = vmatprep.subr.mxu0 0.0
      %377 = vmatpush1.msra.mxu0 %v264
      %378 = vmatprep.subr.mxu0 0.0
      %379 = vmatpush1.msra.mxu0 %v265
      %380 = vmatprep.subr.mxu0 0.0
      %381 = vmatpush1.msra.mxu0 %v266
      %382 = vmatprep.subr.mxu0 0.0
      %383 = vmatpush1.msra.mxu0 %v267
      %384 = vmatprep.subr.mxu0 0.0
      %385 = vmatpush1.msra.mxu0 %v268
      %386 = vmatprep.subr.mxu0 0.0
      %387 = vmatpush1.msra.mxu0 %v269
      %388 = vmatprep.subr.mxu0 0.0
      %389 = vmatpush1.msra.mxu0 %v270
      %390 = vmatprep.subr.mxu0 0.0
      %391 = vmatpush1.msra.mxu0 %v271
      %392 = vmatprep.subr.mxu0 0.0
      %393 = vmatpush1.msra.mxu0 %v272
      %394 = vmatprep.subr.mxu0 0.0
      %395 = vmatpush1.msra.mxu0 %v273
      %396 = vmatprep.subr.mxu0 0.0
      %397 = vmatpush1.msra.mxu0 %v274
      %398 = vmatprep.subr.mxu0 0.0
      %399 = vmatpush1.msra.mxu0 %v275
      %400 = vmatprep.subr.mxu0 0.0
      %401 = vmatpush1.msra.mxu0 %v276
      %402 = vmatprep.subr.mxu0 0.0
      %403 = vmatpush1.msra.mxu0 %v277
      %404 = vmatprep.subr.mxu0 0.0
      %405 = vmatpush1.msra.mxu0 0.0
      %406 = vmatprep.subr.mxu0 0.0
      %407 = vmatpush1.msra.mxu0 0.0
      %408 = vmatprep.subr.mxu0 0.0
      %409 = vmatpush1.msra.mxu0 0.0
      %410 = vmatprep.subr.mxu0 0.0
      %411 = vmatpush1.msra.mxu0 0.0
      %412 = vmatprep.subr.mxu0 0.0
      %413 = vmatpush1.msra.mxu0 0.0
      %414 = vmatprep.subr.mxu0 0.0
      %415 = vmatpush1.msra.mxu0 0.0
      %416 = vmatprep.subr.mxu0 0.0
      %417 = vmatpush1.msra.mxu0 0.0
      %418 = vmatprep.subr.mxu0 0.0
      %419 = vmatpush1.msra.mxu0 0.0
      %420 = vmatprep.subr.mxu0 0.0
      %421 = vmatpush1.msra.mxu0 0.0
      %422 = vmatprep.subr.mxu0 0.0
      %423 = vmatpush1.msra.mxu0 0.0
      %424 = vmatprep.subr.mxu0 0.0
      %425 = vmatpush1.msra.mxu0 0.0
      %426 = vmatprep.subr.mxu0 0.0
      %427 = vmatpush1.msra.mxu0 0.0
      %428 = vmatprep.subr.mxu0 0.0
      %429 = vmatpush1.msra.mxu0 0.0
      %430 = vmatprep.subr.mxu0 0.0
      %431 = vmatpush1.msra.mxu0 0.0
      %432 = vmatprep.subr.mxu0 0.0
      %433 = vmatpush1.msra.mxu0 0.0
      %434 = vmatprep.subr.mxu0 0.0
      %435 = vmatpush1.msra.mxu0 0.0
      %436 = vmatprep.mubr.f32.mxu0 0.0
      %437 = vmatmul.mubr.f32.gmra.mrb[0].mxu0 %v260
      %v438 = vpop.f32.mrb[0].mxu0
      %v439 = vadd.f32 %v364, %v438
      %v440 = vpop.f32.mrb[0].mxu0
      %441 = vmatprep.mubr.f32.mxu0 0.0
      %442 = vmatmul.mubr.f32.gmra.mrb[0].mxu0 %v261
      %v443 = vpop.f32.mrb[0].mxu0
      %v444 = vadd.f32 %v369, %v443
      %v445 = vpop.f32.mrb[0].mxu0
      %446 = vdwg.mxu0
      %v447 = vld [vmem:[#allocation2 + $0x2] sm:$0xff]
      %v448 = vld [vmem:[#allocation2 + $0xa] sm:$0xff]
      %s449 = scalar_lea.vmem %s3, 256
      %v450 = vld [vmem:[%s449] sm:$0xff]
      %v451 = vld [vmem:[%s449 + $0x8] sm:$0xff]
      %v452 = vld [vmem:[%s449 + $0x10] sm:$0xff]
      %v453 = vld [vmem:[%s449 + $0x18] sm:$0xff]
      %v454 = vld [vmem:[%s449 + $0x20] sm:$0xff]
      %v455 = vld [vmem:[%s449 + $0x28] sm:$0xff]
      %v456 = vld [vmem:[%s449 + $0x30] sm:$0xff]
      %v457 = vld [vmem:[%s449 + $0x38] sm:$0xff]
      %v458 = vld [vmem:[%s449 + $0x40] sm:$0xff]
      %v459 = vld [vmem:[%s449 + $0x48] sm:$0xff]
      %v460 = vld [vmem:[%s449 + $0x50] sm:$0xff]
      %v461 = vld [vmem:[%s449 + $0x58] sm:$0xff]
      %v462 = vld [vmem:[%s449 + $0x60] sm:$0xff]
      %v463 = vld [vmem:[%s449 + $0x68] sm:$0xff]
      %v464 = vld [vmem:[%s449 + $0x70] sm:$0xff]
      %v465 = vld [vmem:[%s449 + $0x78] sm:$0xff]
      %466 = vmatprep.subr.mxu0 0.0
      %467 = vmatpush1.msra.mxu0 %v450
      %468 = vmatprep.subr.mxu0 0.0
      %469 = vmatpush1.msra.mxu0 %v451
      %470 = vmatprep.subr.mxu0 0.0
      %471 = vmatpush1.msra.mxu0 %v452
      %472 = vmatprep.subr.mxu0 0.0
      %473 = vmatpush1.msra.mxu0 %v453
      %474 = vmatprep.subr.mxu0 0.0
      %475 = vmatpush1.msra.mxu0 %v454
      %476 = vmatprep.subr.mxu0 0.0
      %477 = vmatpush1.msra.mxu0 %v455
      %478 = vmatprep.subr.mxu0 0.0
      %479 = vmatpush1.msra.mxu0 %v456
      %480 = vmatprep.subr.mxu0 0.0
      %481 = vmatpush1.msra.mxu0 %v457
      %482 = vmatprep.subr.mxu0 0.0
      %483 = vmatpush1.msra.mxu0 %v458
      %484 = vmatprep.subr.mxu0 0.0
      %485 = vmatpush1.msra.mxu0 %v459
      %486 = vmatprep.subr.mxu0 0.0
      %487 = vmatpush1.msra.mxu0 %v460
      %488 = vmatprep.subr.mxu0 0.0
      %489 = vmatpush1.msra.mxu0 %v461
      %490 = vmatprep.subr.mxu0 0.0
      %491 = vmatpush1.msra.mxu0 %v462
      %492 = vmatprep.subr.mxu0 0.0
      %493 = vmatpush1.msra.mxu0 %v463
      %494 = vmatprep.subr.mxu0 0.0
      %495 = vmatpush1.msra.mxu0 %v464
      %496 = vmatprep.subr.mxu0 0.0
      %497 = vmatpush1.msra.mxu0 %v465
      %498 = vmatprep.subr.mxu0 0.0
      %499 = vmatpush1.msra.mxu0 0.0
      %500 = vmatprep.subr.mxu0 0.0
      %501 = vmatpush1.msra.mxu0 0.0
      %502 = vmatprep.subr.mxu0 0.0
      %503 = vmatpush1.msra.mxu0 0.0
      %504 = vmatprep.subr.mxu0 0.0
      %505 = vmatpush1.msra.mxu0 0.0
      %506 = vmatprep.subr.mxu0 0.0
      %507 = vmatpush1.msra.mxu0 0.0
      %508 = vmatprep.subr.mxu0 0.0
      %509 = vmatpush1.msra.mxu0 0.0
      %510 = vmatprep.subr.mxu0 0.0
      %511 = vmatpush1.msra.mxu0 0.0
      %512 = vmatprep.subr.mxu0 0.0
      %513 = vmatpush1.msra.mxu0 0.0
      %514 = vmatprep.subr.mxu0 0.0
      %515 = vmatpush1.msra.mxu0 0.0
      %516 = vmatprep.subr.mxu0 0.0
      %517 = vmatpush1.msra.mxu0 0.0
      %518 = vmatprep.subr.mxu0 0.0
      %519 = vmatpush1.msra.mxu0 0.0
      %520 = vmatprep.subr.mxu0 0.0
      %521 = vmatpush1.msra.mxu0 0.0
      %522 = vmatprep.subr.mxu0 0.0
      %523 = vmatpush1.msra.mxu0 0.0
      %524 = vmatprep.subr.mxu0 0.0
      %525 = vmatpush1.msra.mxu0 0.0
      %526 = vmatprep.subr.mxu0 0.0
      %527 = vmatpush1.msra.mxu0 0.0
      %528 = vmatprep.subr.mxu0 0.0
      %529 = vmatpush1.msra.mxu0 0.0
      %530 = vmatprep.mubr.f32.mxu0 0.0
      %531 = vmatmul.mubr.f32.gmra.mrb[0].mxu0 %v447
      %v532 = vpop.f32.mrb[0].mxu0
      %v533 = vadd.f32 0.0, %v532
      %v534 = vpop.f32.mrb[0].mxu0
      %535 = vmatprep.mubr.f32.mxu0 0.0
      %536 = vmatmul.mubr.f32.gmra.mrb[0].mxu0 %v448
      %v537 = vpop.f32.mrb[0].mxu0
      %v538 = vadd.f32 0.0, %v537
      %v539 = vpop.f32.mrb[0].mxu0
      %540 = vdwg.mxu0
      %v541 = vadd.f32 %v439, %v533
      %v542 = vadd.f32 %v444, %v538
      %543 = vst [vmem:[%s231] sm:$0xff] %v541
      %544 = vst [vmem:[%s231 + $0x8] sm:$0xff] %v542
      %v545 = vadd.f32 %v541, %v542
      %v546 = vrot.slane %v545, 4
      %v547 = vadd.f32 %v545, %v546
      %v548 = vrot.slane %v547, 2
      %v549 = vadd.f32 %v547, %v548
      %v550 = vrot.slane %v549, 1
      %v551 = vadd.f32 %v549, %v550
      %v552 = vmul.f32 %v551, 0.0625
      %v553 = vsub.f32 %v541, %v552
      %v554 = vsub.f32 %v542, %v552
      %v555 = vmul.f32 %v553, %v553
      %v556 = vmul.f32 %v554, %v554
      %v557 = vadd.f32 %v555, %v556
      %v558 = vrot.slane %v557, 4
      %v559 = vadd.f32 %v557, %v558
      %v560 = vrot.slane %v559, 2
      %v561 = vadd.f32 %v559, %v560
      %v562 = vrot.slane %v561, 1
      %v563 = vadd.f32 %v561, %v562
      %564 = vst [vmem:[%s235] sm:$0x1] %v552
      %565 = vst [vmem:[%s235 + $0x1] sm:$0x1] %v563
      %p566 = scmp.lt.s32.totalorder %s17, 1
      %s567 = scalar_select %p566, %s17, 1
      %s568 = smul.addr %s567, 2
      %s569 = smul.addr %s568, 8
      %s570 = scalar_lea.vmem %s4, %s569
      %p571 = scmp.lt.s32.totalorder %s17, 1
      %s572 = scalar_select %p571, %s17, 1
      %s573 = smul.addr %s572, 2
      %s574 = scalar_lea.vmem %s5, %s573
      // Predicated region
      $region37: #{residual_block.3} parent=35 // pred_check
        %p575 = pneg %p124
      $region38: #{residual_block.3} parent=35 // pred_check_branch
        %577 = sbr.rel (%p575) target = $region40
      $region39: #{residual_block.3} parent=35 // pred_region
        _
      $region40: #{residual_block.3} parent=35 // pred_fallthru
        _
      // Predicated region
      $region41: #{residual_block.3} parent=35 // pred_check
        %p578 = pneg %p150
      $region42: #{residual_block.3} parent=35 // pred_check_branch
        %580 = sbr.rel (%p578) target = $region44
      $region43: #{residual_block.3} parent=35 // pred_region
        _
      $region44: #{residual_block.3} parent=35 // pred_fallthru
        _
    $region36: #{residual_block.3} parent=5 // pred_fallthru
      _
    %p581 = scmp.le.s32.totalorder 2, %s12
    // Predicated region
    $region45: #{residual_block.3} parent=5 // pred_check
      %p582 = pneg %p581
    $region46: #{residual_block.3} parent=5 // pred_check_branch
      %584 = sbr.rel (%p582) target = $region48
    $region47: #{residual_block.3} parent=5 // pred_region
      %s585 = ssub.s32 %s12, 2
      // Predicated region
      $region49: #{residual_block.3} parent=47 // pred_check
        %p586 = pneg %p130
      $region50: #{residual_block.3} parent=47 // pred_check_branch
        %588 = sbr.rel (%p586) target = $region52
      $region51: #{residual_block.3} parent=47 // pred_region
        %p589 = scmp.lt.s32.totalorder %s18, 1
        %s590 = scalar_select %p589, %s18, 1
        %s591 = smul.addr %s590, 2
        %s592 = smul.addr %s591, 8
        %s593 = scalar_lea.vmem %s4, %s592
      $region52: #{residual_block.3} parent=47 // pred_fallthru
        _
      // Predicated region
      $region53: #{residual_block.3} parent=47 // pred_check
        %p594 = pneg %p156
      $region54: #{residual_block.3} parent=47 // pred_check_branch
        %596 = sbr.rel (%p594) target = $region56
      $region55: #{residual_block.3} parent=47 // pred_region
        %p597 = scmp.lt.s32.totalorder %s18, 1
        %s598 = scalar_select %p597, %s18, 1
        %s599 = smul.addr %s598, 2
        %s600 = scalar_lea.vmem %s5, %s599
      $region56: #{residual_block.3} parent=47 // pred_fallthru
        _
    $region48: #{residual_block.3} parent=5 // pred_fallthru
      _
  $region6: #{residual_block.3} parent=0 // loop_footer
    %s16 = sadd.s32 1, %s12
  $region7: #{residual_block.3} parent=0 // loop_footer_branch
    %11 = sbr.rel target = $region3
  $region8: #{residual_block.3} parent=0 // loop_exit
    _

// kernel: residual_block.4
$region0: #{residual_block.4}
  #allocation0 [shape = 'u32[]', space=smem, size = 0x4, offset = 0x4, fixed_abs, tag = 'smem constant byte address 0x4 - core index']
  #allocation1 [shape = 'u32[144,128]{1,0:T(1,128)}', space=vmem, size = 0x12000, scoped, tag = 'internal scratch']
  #allocation2 [shape = 'f32[18,128]{1,0:T(8,128)}', space=vmem, size = 0x3000, scoped, tag = 'scratch operand']
  %s0 = inlined_call_operand.vmem [shape: f32[2,16,128], index: 0, kind: input, shape index: {}]
  %s1 = inlined_call_operand.vmem [shape: f32[1,128], index: 1, kind: input, shape index: {}]
  %s2 = inlined_call_operand.vmem [shape: f32[1,128], index: 2, kind: input, shape index: {}]
  %s3 = inlined_call_operand.vmem [shape: f32[3,128,128], index: 3, kind: input, shape index: {}]
  %s4 = inlined_call_operand.vmem [shape: f32[2,16,128], index: 4, kind: output, shape index: {0}]
  %s5 = inlined_call_operand.vmem [shape: f32[2,2,128], index: 5, kind: output, shape index: {1}]
  %6 = xla_tuple %s4, %s5
  %s7 = sld [smem:[#allocation0]]
  $region57: #{residual_block.4} parent=0
    _
  %s9 = ssub.s32 1, %s7
  %s10 = scalar_select 0, %s9, %s7
  loop: start=0, step=1, limit=4
  $region2: #{residual_block.4} parent=0 // loop_pre_header
    _
  $region3: #{residual_block.4} parent=0 // loop_header
    %s12 = sphi 0, %s16
    %p13 = scmp.ge.s32.totalorder %s12, 4
    %s22 = sphi 0, %s24
    %s25 = sphi 0, %s22
    %s26 = sphi 0, %s25
    %s42 = sphi 0, %s26
    %s46 = sphi 0, %s46
    %s48 = sphi 0, %s46
    %s49 = sphi 0, %s48
    %s63 = sphi 0, %s49
    %s67 = sphi 0, %s67
    %s69 = sphi 0, %s67
    %s70 = sphi 0, %s69
    %s84 = sphi 0, %s70
    %s88 = sphi 0, %s88
    %s90 = sphi 0, %s88
    %s91 = sphi 0, %s90
    %s105 = sphi 0, %s91
    %s111 = sphi 0, %s113
    %s114 = sphi 0, %s111
    %s115 = sphi 0, %s114
    %s131 = sphi 0, %s115
    %s137 = sphi 0, %s139
    %s140 = sphi 0, %s137
    %s141 = sphi 0, %s140
    %s157 = sphi 0, %s141
  $region4: #{residual_block.4} parent=0 // loop_header_branch
    %15 = sbr.rel (%p13) target = $region8
  $region5: #{residual_block.4} parent=0 // loop_body
    %s17 = ssub.s32 %s12, 1
    %s18 = ssub.s32 %s12, 2
    %s19 = sadd.s32 %s12, 1
    %s20 = ssub.s32 %s12, %s19
    %p21 = scmp.eq.s32.totalorder %s20, 0
    %s23 = sadd.s32 %s22, 1
    %s24 = scalar_select %p21, %s22, %s23
    %p27 = pneg %p21
    %p28 = scmp.eq.s32.totalorder %s12, 1
    %p29 = por %p27, %p28
    %p30 = scmp.ne.s32.totalorder %s22, %s25
    %p31 = scmp.eq.s32.totalorder %s12, 0
    %p32 = por %p30, %p31
    %p33 = scmp.ne.s32.totalorder %s22, %s25
    %p34 = scmp.eq.s32.totalorder %s17, 1
    %p35 = por %p33, %p34
    %p36 = scmp.ne.s32.totalorder %s25, %s26
    %p37 = scmp.eq.s32.totalorder %s17, 0
    %p38 = por %p36, %p37
    %p39 = scmp.ne.s32.totalorder %s25, %s26
    %p40 = scmp.eq.s32.totalorder %s18, 1
    %p41 = por %p39, %p40
    %p43 = scmp.ne.s32.totalorder %s26, %s42
    %p44 = scmp.eq.s32.totalorder %s18, 0
    %p45 = por %p43, %p44
    %s47 = sadd.s32 %s46, 1
    %p50 = scmp.eq.s32.totalorder %s12, 1
    %p51 = scmp.ne.s32.totalorder %s46, %s48
    %p52 = scmp.eq.s32.totalorder %s12, 0
    %p53 = por %p51, %p52
    %p54 = scmp.ne.s32.totalorder %s46, %s48
    %p55 = scmp.eq.s32.totalorder %s17, 1
    %p56 = por %p54, %p55
    %p57 = scmp.ne.s32.totalorder %s48, %s49
    %p58 = scmp.eq.s32.totalorder %s17, 0
    %p59 = por %p57, %p58
    %p60 = scmp.ne.s32.totalorder %s48, %s49
    %p61 = scmp.eq.s32.totalorder %s18, 1
    %p62 = por %p60, %p61
    %p64 = scmp.ne.s32.totalorder %s49, %s63
    %p65 = scmp.eq.s32.totalorder %s18, 0
    %p66 = por %p64, %p65
    %s68 = sadd.s32 %s67, 1
    %p71 = scmp.eq.s32.totalorder %s12, 1
    %p72 = scmp.ne.s32.totalorder %s67, %s69
    %p73 = scmp.eq.s32.totalorder %s12, 0
    %p74 = por %p72, %p73
    %p75 = scmp.ne.s32.totalorder %s67, %s69
    %p76 = scmp.eq.s32.totalorder %s17, 1
    %p77 = por %p75, %p76
    %p78 = scmp.ne.s32.totalorder %s69, %s70
    %p79 = scmp.eq.s32.totalorder %s17, 0
    %p80 = por %p78, %p79
    %p81 = scmp.ne.s32.totalorder %s69, %s70
    %p82 = scmp.eq.s32.totalorder %s18, 1
    %p83 = por %p81, %p82
    %p85 = scmp.ne.s32.totalorder %s70, %s84
    %p86 = scmp.eq.s32.totalorder %s18, 0
    %p87 = por %p85, %p86
    %s89 = sadd.s32 %s88, 1
    %p92 = scmp.eq.s32.totalorder %s12, 1
    %p93 = scmp.ne.s32.totalorder %s88, %s90
    %p94 = scmp.eq.s32.totalorder %s12, 0
    %p95 = por %p93, %p94
    %p96 = scmp.ne.s32.totalorder %s88, %s90
    %p97 = scmp.eq.s32.totalorder %s17, 1
    %p98 = por %p96, %p97
    %p99 = scmp.ne.s32.totalorder %s90, %s91
    %p100 = scmp.eq.s32.totalorder %s17, 0
    %p101 = por %p99, %p100
    %p102 = scmp.ne.s32.totalorder %s90, %s91
    %p103 = scmp.eq.s32.totalorder %s18, 1
    %p104 = por %p102, %p103
    %p106 = scmp.ne.s32.totalorder %s91, %s105
    %p107 = scmp.eq.s32.totalorder %s18, 0
    %p108 = por %p106, %p107
    %s109 = ssub.s32 %s12, %s19
    %p110 = scmp.eq.s32.totalorder %s109, 0
    %s112 = sadd.s32 %s111, 1
    %s113 = scalar_select %p110, %s111, %s112
    %p116 = pneg %p110
    %p117 = scmp.eq.s32.totalorder %s12, 1
    %p118 = por %p116, %p117
    %p119 = scmp.ne.s32.totalorder %s111, %s114
    %p120 = scmp.eq.s32.totalorder %s12, 0
    %p121 = por %p119, %p120
    %p122 = scmp.ne.s32.totalorder %s111, %s114
    %p123 = scmp.eq.s32.totalorder %s17, 1
    %p124 = por %p122, %p123
    %p125 = scmp.ne.s32.totalorder %s114, %s115
    %p126 = scmp.eq.s32.totalorder %s17, 0
    %p127 = por %p125, %p126
    %p128 = scmp.ne.s32.totalorder %s114, %s115
    %p129 = scmp.eq.s32.totalorder %s18, 1
    %p130 = por %p128, %p129
    %p132 = scmp.ne.s32.totalorder %s115, %s131
    %p133 = scmp.eq.s32.totalorder %s18, 0
    %p134 = por %p132, %p133
    %s135 = ssub.s32 %s12, %s19
    %p136 = scmp.eq.s32.totalorder %s135, 0
    %s138 = sadd.s32 %s137, 1
    %s139 = scalar_select %p136, %s137, %s138
    %p142 = pneg %p136
    %p143 = scmp.eq.s32.totalorder %s12, 1
    %p144 = por %p142, %p143
    %p145 = scmp.ne.s32.totalorder %s137, %s140
    %p146 = scmp.eq.s32.totalorder %s12, 0
    %p147 = por %p145, %p146
    %p148 = scmp.ne.s32.totalorder %s137, %s140
    %p149 = scmp.eq.s32.totalorder %s17, 1
    %p150 = por %p148, %p149
    %p151 = scmp.ne.s32.totalorder %s140, %s141
    %p152 = scmp.eq.s32.totalorder %s17, 0
    %p153 = por %p151, %p152
    %p154 = scmp.ne.s32.totalorder %s140, %s141
    %p155 = scmp.eq.s32.totalorder %s18, 1
    %p156 = por %p154, %p155
    %p158 = scmp.ne.s32.totalorder %s141, %s157
    %p159 = scmp.eq.s32.totalorder %s18, 0
    %p160 = por %p158, %p159
    %p161 = scmp.le.s32.totalorder 1, %s12
    %p162 = scmp.lt.s32.totalorder %s12, 3
    %p163 = pnand %p161, %p162
    %p164 = pneg %p163
    // Predicated region
    $region9: #{residual_block.4} parent=5 // pred_check
      _
    $region10: #{residual_block.4} parent=5 // pred_check_branch
      %166 = sbr.rel (%p163) target = $region12
    $region11: #{residual_block.4} parent=5 // pred_region
      %s167 = ssub.s32 %s12, 1
      // Predicated region
      $region13: #{residual_block.4} parent=11 // pred_check
        %p168 = pneg %p59
      $region14: #{residual_block.4} parent=11 // pred_check_branch
        %170 = sbr.rel (%p168) target = $region16
      $region15: #{residual_block.4} parent=11 // pred_region
        _
      $region16: #{residual_block.4} parent=11 // pred_fallthru
        _
      // Predicated region
      $region17: #{residual_block.4} parent=11 // pred_check
        %p171 = pneg %p80
      $region18: #{residual_block.4} parent=11 // pred_check_branch
        %173 = sbr.rel (%p171) target = $region20
      $region19: #{residual_block.4} parent=11 // pred_region
        _
      $region20: #{residual_block.4} parent=11 // pred_fallthru
        _
      // Predicated region
      $region21: #{residual_block.4} parent=11 // pred_check
        %p174 = pneg %p101
      $region22: #{residual_block.4} parent=11 // pred_check_branch
        %176 = sbr.rel (%p174) target = $region24
      $region23: #{residual_block.4} parent=11 // pred_region
        _
      $region24: #{residual_block.4} parent=11 // pred_fallthru
        _
    $region12: #{residual_block.4} parent=5 // pred_fallthru
      _
    %p177 = scmp.lt.s32.totalorder %s12, 2
    // Predicated region
    $region25: #{residual_block.4} parent=5 // pred_check
      %p178 = pneg %p177
    $region26: #{residual_block.4} parent=5 // pred_check_branch
      %180 = sbr.rel (%p178) target = $region28
    $region27: #{residual_block.4} parent=5 // pred_region
      // Predicated region
      $region29: #{residual_block.4} parent=27 // pred_check
        %p181 = pneg %p32
      $region30: #{residual_block.4} parent=27 // pred_check_branch
        %183 = sbr.rel (%p181) target = $region32
      $region31: #{residual_block.4} parent=27 // pred_region
        %p184 = scmp.lt.s32.totalorder %s12, 1
        %s185 = scalar_select %p184, %s12, 1
        %s186 = smul.addr %s185, 2
        %s187 = smul.addr %s186, 8
        %s188 = scalar_lea.vmem %s0, %s187
      $region32: #{residual_block.4} parent=27 // pred_fallthru
        _
    $region28: #{residual_block.4} parent=5 // pred_fallthru
      _
    %p189 = scmp.le.s32.totalorder 1, %s12
    %p190 = scmp.lt.s32.totalorder %s12, 3
    %p191 = pnand %p189, %p190
    %p192 = pneg %p191
    // Predicated region
    $region33: #{residual_block.4} parent=5 // pred_check
      _
    $region34: #{residual_block.4} parent=5 // pred_check_branch
      %194 = sbr.rel (%p191) target = $region36
    $region35: #{residual_block.4} parent=5 // pred_region
      %s195 = ssub.s32 %s12, 1
      %p196 = scmp.lt.s32.totalorder %s17, 1
      %s197 = scalar_select %p196, %s17, 1
      %s198 = smul.addr %s197, 2
      %s199 = smul.addr %s198, 8
      %s200 = scalar_lea.vmem %s0, %s199
      %p201 = pneg %p38
      %p202 = pneg %p35
      %p203 = pneg %p59
      %p204 = pneg %p56
      %p205 = pneg %p80
      %p206 = pneg %p77
      %p207 = pneg %p101
      %p208 = pneg %p98
      %p209 = pneg %p127
      %p210 = pneg %p124
      %p211 = scmp.lt.s32.totalorder %s17, 1
      %s212 = scalar_select %p211, %s17, 1
      %s213 = smul.addr %s212, 2
      %s214 = smul.addr %s213, 8
      %s215 = scalar_lea.vmem %s4, %s214
      %p216 = pneg %p153
      %p217 = pneg %p150
      %p218 = scmp.lt.s32.totalorder %s17, 1
      %s219 = scalar_select %p218, %s17, 1
      %s220 = smul.addr %s219, 2
      %s221 = scalar_lea.vmem %s5, %s220
      %p222 = scmp.lt.s32.totalorder %s17, 1
      %s223 = scalar_select %p222, %s17, 1
      %s224 = smul.addr %s223, 2
      %s225 = smul.addr %s224, 8
      %s226 = scalar_lea.vmem %s0, %s225
      %p227 = scmp.lt.s32.totalorder %s17, 1
      %s228 = scalar_select %p227, %s17, 1
      %s229 = smul.addr %s228, 2
      %s230 = smul.addr %s229, 8
      %s231 = scalar_lea.vmem %s4, %s230
      %p232 = scmp.lt.s32.totalorder %s17, 1
      %s233 = scalar_select %p232, %s17, 1
      %s234 = smul.addr %s233, 2
      %s235 = scalar_lea.vmem %s5, %s234
      %v236 = vld [vmem:[%s226] sm:$0xff]
      %v237 = vld [vmem:[%s226 + $0x8] sm:$0xff]
      %v238 = vld [vmem:[%s1] sm:$0x1]
      %v240 = vlaneseq
      %v241 = vshrl.u32 %v240, 7
      %v242 = vsub.s32 0, %v241
      %v243 = vrot.slane %v238, %v242
      %v245 = vmul.f32 %v236, %v243
      %v246 = vmul.f32 %v237, %v243
      %v247 = vld [vmem:[%s2] sm:$0x1]
      %v249 = vlaneseq
      %v250 = vshrl.u32 %v249, 7
      %v251 = vsub.s32 0, %v250
      %v252 = vrot.slane %v247, %v251
      %v254 = vadd.f32 %v245, %v252
      %v255 = vadd.f32 %v246, %v252
      %v256 = vmax.f32 %v254, 0.0
      %v257 = vmax.f32 %v255, 0.0
      %258 = vst [vmem:[#allocation2] sm:$0x1] 0.0
      %259 = vst [vmem:[#allocation2 + $0x11] sm:$0x1] 0.0
      %260 = vst [vmem:[#allocation2 + $0x1] sm:$0xff] %v256
      %261 = vst [vmem:[#allocation2 + $0x9] sm:$0xff] %v257
      %v262 = vld [vmem:[#allocation2] sm:$0xff]
      %v263 = vld [vmem:[#allocation2 + $0x8] sm:$0xff]
      %v264 = vld [vmem:[%s3] sm:$0xff]
      %v265 = vld [vmem:[%s3 + $0x8] sm:$0xff]
      %v266 = vld [vmem:[%s3 + $0x10] sm:$0xff]
      %v267 = vld [vmem:[%s3 + $0x18] sm:$0xff]
      %v268 = vld [vmem:[%s3 + $0x20] sm:$0xff]
      %v269 = vld [vmem:[%s3 + $0x28] sm:$0xff]
      %v270 = vld [vmem:[%s3 + $0x30] sm:$0xff]
      %v271 = vld [vmem:[%s3 + $0x38] sm:$0xff]
      %v272 = vld [vmem:[%s3 + $0x40] sm:$0xff]
      %v273 = vld [vmem:[%s3 + $0x48] sm:$0xff]
      %v274 = vld [vmem:[%s3 + $0x50] sm:$0xff]
      %v275 = vld [vmem:[%s3 + $0x58] sm:$0xff]
      %v276 = vld [vmem:[%s3 + $0x60] sm:$0xff]
      %v277 = vld [vmem:[%s3 + $0x68] sm:$0xff]
      %v278 = vld [vmem:[%s3 + $0x70] sm:$0xff]
      %v279 = vld [vmem:[%s3 + $0x78] sm:$0xff]
      %v280 = vld [vmem:[#allocation2 + $0x1] sm:$0xff]
      %v281 = vld [vmem:[#allocation2 + $0x9] sm:$0xff]
      %s282 = scalar_lea.vmem %s3, 128
      %v283 = vld [vmem:[%s282] sm:$0xff]
      %v284 = vld [vmem:[%s282 + $0x8] sm:$0xff]
      %v285 = vld [vmem:[%s282 + $0x10] sm:$0xff]
      %v286 = vld [vmem:[%s282 + $0x18] sm:$0xff]
      %v287 = vld [vmem:[%s282 + $0x20] sm:$0xff]
      %v288 = vld [vmem:[%s282 + $0x28] sm:$0xff]
      %v289 = vld [vmem:[%s282 + $0x30] sm:$0xff]
      %v290 = vld [vmem:[%s282 + $0x38] sm:$0xff]
      %v291 = vld [vmem:[%s282 + $0x40] sm:$0xff]
      %v292 = vld [vmem:[%s282 + $0x48] sm:$0xff]
      %v293 = vld [vmem:[%s282 + $0x50] sm:$0xff]
      %v294 = vld [vmem:[%s282 + $0x58] sm:$0xff]
      %v295 = vld [vmem:[%s282 + $0x60] sm:$0xff]
      %v296 = vld [vmem:[%s282 + $0x68] sm:$0xff]
      %v297 = vld [vmem:[%s282 + $0x70] sm:$0xff]
      %v298 = vld [vmem:[%s282 + $0x78] sm:$0xff]
      %299 = vmatprep.subr.mxu0 0.0
      %300 = vmatpush1.msra.mxu0 %v283
      %301 = vmatprep.subr.mxu0 0.0
      %302 = vmatpush1.msra.mxu0 %v284
      %303 = vmatprep.subr.mxu0 0.0
      %304 = vmatpush1.msra.mxu0 %v285
      %305 = vmatprep.subr.mxu0 0.0
      %306 = vmatpush1.msra.mxu0 %v286
      %307 = vmatprep.subr.mxu0 0.0
      %308 = vmatpush1.msra.mxu0 %v287
      %309 = vmatprep.subr.mxu0 0.0
      %310 = vmatpush1.msra.mxu0 %v288
      %311 = vmatprep.subr.mxu0 0.0
      %312 = vmatpush1.msra.mxu0 %v289
      %313 = vmatprep.subr.mxu0 0.0
      %314 = vmatpush1.msra.mxu0 %v290
      %315 = vmatprep.subr.mxu0 0.0
      %316 = vmatpush1.msra.mxu0 %v291
      %317 = vmatprep.subr.mxu0 0.0
      %318 = vmatpush1.msra.mxu0 %v292
      %319 = vmatprep.subr.mxu0 0.0
      %320 = vmatpush1.msra.mxu0 %v293
      %321 = vmatprep.subr.mxu0 0.0
      %322 = vmatpush1.msra.mxu0 %v294
      %323 = vmatprep.subr.mxu0 0.0
      %324 = vmatpush1.msra.mxu0 %v295
      %325 = vmatprep.subr.mxu0 0.0
      %326 = vmatpush1.msra.mxu0 %v296
      %327 = vmatprep.subr.mxu0 0.0
      %328 = vmatpush1.msra.mxu0 %v297
      %329 = vmatprep.subr.mxu0 0.0
      %330 = vmatpush1.msra.mxu0 %v298
      %331 = vmatprep.subr.mxu0 0.0
      %332 = vmatpush1.msra.mxu0 0.0
      %333 = vmatprep.subr.mxu0 0.0
      %334 = vmatpush1.msra.mxu0 0.0
      %335 = vmatprep.subr.mxu0 0.0
      %336 = vmatpush1.msra.mxu0 0.0
      %337 = vmatprep.subr.mxu0 0.0
      %338 = vmatpush1.msra.mxu0 0.0
      %339 = vmatprep.subr.mxu0 0.0
      %340 = vmatpush1.msra.mxu0 0.0
      %341 = vmatprep.subr.mxu0 0.0
      %342 = vmatpush1.msra.mxu0 0.0
      %343 = vmatprep.subr.mxu0 0.0
      %344 = vmatpush1.msra.mxu0 0.0
      %345 = vmatprep.subr.mxu0 0.0
      %346 = vmatpush1.msra.mxu0 0.0
      %347 = vmatprep.subr.mxu0 0.0
      %348 = vmatpush1.msra.mxu0 0.0
      %349 = vmatprep.subr.mxu0 0.0
      %350 = vmatpush1.msra.mxu0 0.0
      %351 = vmatprep.subr.mxu0 0.0
      %352 = vmatpush1.msra.mxu0 0.0
      %353 = vmatprep.subr.mxu0 0.0
      %354 = vmatpush1.msra.mxu0 0.0
      %355 = vmatprep.subr.mxu0 0.0
      %356 = vmatpush1.msra.mxu0 0.0
      %357 = vmatprep.subr.mxu0 0.0
      %358 = vmatpush1.msra.mxu0 0.0
      %359 = vmatprep.subr.mxu0 0.0
      %360 = vmatpush1.msra.mxu0 0.0
      %361 = vmatprep.subr.mxu0 0.0
      %362 = vmatpush1.msra.mxu0 0.0
      %363 = vmatprep.mubr.f32.mxu0 0.0
      %364 = vmatmul.mubr.f32.gmra.mrb[0].mxu0 %v280
      %v365 = vpop.f32.mrb[0].mxu0
      %v366 = vadd.f32 0.0, %v365
      %v367 = vpop.f32.mrb[0].mxu0
      %368 = vmatprep.mubr.f32.mxu0 0.0
      %369 = vmatmul.mubr.f32.gmra.mrb[0].mxu0 %v281
      %v370 = vpop.f32.mrb[0].mxu0
      %v371 = vadd.f32 0.0, %v370
      %v372 = vpop.f32.mrb[0].mxu0
      %373 = vdwg.mxu0
      %374 = vmatprep.subr.mxu0 0.0
      %375 = vmatpush1.msra.mxu0 %v264
      %376 = vmatprep.subr.mxu0 0.0
      %377 = vmatpush1.msra.mxu0 %v265
      %378 = vmatprep.subr.mxu0 0.0
      %379 = vmatpush1.msra.mxu0 %v266
      %380 = vmatprep.subr.mxu0 0.0
      %381 = vmatpush1.msra.mxu0 %v267
      %382 = vmatprep.subr.mxu0 0.0
      %383 = vmatpush1.msra.mxu0 %v268
      %384 = vmatprep.subr.mxu0 0.0
      %385 = vmatpush1.msra.mxu0 %v269
      %386 = vmatprep.subr.mxu0 0.0
      %387 = vmatpush1.msra.mxu0 %v270
      %388 = vmatprep.subr.mxu0 0.0
      %389 = vmatpush1.msra.mxu0 %v271
      %390 = vmatprep.subr.mxu0 0.0
      %391 = vmatpush1.msra.mxu0 %v272
      %392 = vmatprep.subr.mxu0 0.0
      %393 = vmatpush1.msra.mxu0 %v273
      %394 = vmatprep.subr.mxu0 0.0
      %395 = vmatpush1.msra.mxu0 %v274
      %396 = vmatprep.subr.mxu0 0.0
      %397 = vmatpush1.msra.mxu0 %v275
      %398 = vmatprep.subr.mxu0 0.0
      %399 = vmatpush1.msra.mxu0 %v276
      %400 = vmatprep.subr.mxu0 0.0
      %401 = vmatpush1.msra.mxu0 %v277
      %402 = vmatprep.subr.mxu0 0.0
      %403 = vmatpush1.msra.mxu0 %v278
      %404 = vmatprep.subr.mxu0 0.0
      %405 = vmatpush1.msra.mxu0 %v279
      %406 = vmatprep.subr.mxu0 0.0
      %407 = vmatpush1.msra.mxu0 0.0
      %408 = vmatprep.subr.mxu0 0.0
      %409 = vmatpush1.msra.mxu0 0.0
      %410 = vmatprep.subr.mxu0 0.0
      %411 = vmatpush1.msra.mxu0 0.0
      %412 = vmatprep.subr.mxu0 0.0
      %413 = vmatpush1.msra.mxu0 0.0
      %414 = vmatprep.subr.mxu0 0.0
      %415 = vmatpush1.msra.mxu0 0.0
      %416 = vmatprep.subr.mxu0 0.0
      %417 = vmatpush1.msra.mxu0 0.0
      %418 = vmatprep.subr.mxu0 0.0
      %419 = vmatpush1.msra.mxu0 0.0
      %420 = vmatprep.subr.mxu0 0.0
      %421 = vmatpush1.msra.mxu0 0.0
      %422 = vmatprep.subr.mxu0 0.0
      %423 = vmatpush1.msra.mxu0 0.0
      %424 = vmatprep.subr.mxu0 0.0
      %425 = vmatpush1.msra.mxu0 0.0
      %426 = vmatprep.subr.mxu0 0.0
      %427 = vmatpush1.msra.mxu0 0.0
      %428 = vmatprep.subr.mxu0 0.0
      %429 = vmatpush1.msra.mxu0 0.0
      %430 = vmatprep.subr.mxu0 0.0
      %431 = vmatpush1.msra.mxu0 0.0
      %432 = vmatprep.subr.mxu0 0.0
      %433 = vmatpush1.msra.mxu0 0.0
      %434 = vmatprep.subr.mxu0 0.0
      %435 = vmatpush1.msra.mxu0 0.0
      %436 = vmatprep.subr.mxu0 0.0
      %437 = vmatpush1.msra.mxu0 0.0
      %438 = vmatprep.mubr.f32.mxu0 0.0
      %439 = vmatmul.mubr.f32.gmra.mrb[0].mxu0 %v262
      %v440 = vpop.f32.mrb[0].mxu0
      %v441 = vadd.f32 %v366, %v440
      %v442 = vpop.f32.mrb[0].mxu0
      %443 = vmatprep.mubr.f32.mxu0 0.0
      %444 = vmatmul.mubr.f32.gmra.mrb[0].mxu0 %v263
      %v445 = vpop.f32.mrb[0].mxu0
      %v446 = vadd.f32 %v371, %v445
      %v447 = vpop.f32.mrb[0].mxu0
      %448 = vdwg.mxu0
      %v449 = vld [vmem:[#allocation2 + $0x2] sm:$0xff]
      %v450 = vld [vmem:[#allocation2 + $0xa] sm:$0xff]
      %s451 = scalar_lea.vmem %s3, 256
      %v452 = vld [vmem:[%s451] sm:$0xff]
      %v453 = vld [vmem:[%s451 + $0x8] sm:$0xff]
      %v454 = vld [vmem:[%s451 + $0x10] sm:$0xff]
      %v455 = vld [vmem:[%s451 + $0x18] sm:$0xff]
      %v456 = vld [vmem:[%s451 + $0x20] sm:$0xff]
      %v457 = vld [vmem:[%s451 + $0x28] sm:$0xff]
      %v458 = vld [vmem:[%s451 + $0x30] sm:$0xff]
      %v459 = vld [vmem:[%s451 + $0x38] sm:$0xff]
      %v460 = vld [vmem:[%s451 + $0x40] sm:$0xff]
      %v461 = vld [vmem:[%s451 + $0x48] sm:$0xff]
      %v462 = vld [vmem:[%s451 + $0x50] sm:$0xff]
      %v463 = vld [vmem:[%s451 + $0x58] sm:$0xff]
      %v464 = vld [vmem:[%s451 + $0x60] sm:$0xff]
      %v465 = vld [vmem:[%s451 + $0x68] sm:$0xff]
      %v466 = vld [vmem:[%s451 + $0x70] sm:$0xff]
      %v467 = vld [vmem:[%s451 + $0x78] sm:$0xff]
      %468 = vmatprep.subr.mxu0 0.0
      %469 = vmatpush1.msra.mxu0 %v452
      %470 = vmatprep.subr.mxu0 0.0
      %471 = vmatpush1.msra.mxu0 %v453
      %472 = vmatprep.subr.mxu0 0.0
      %473 = vmatpush1.msra.mxu0 %v454
      %474 = vmatprep.subr.mxu0 0.0
      %475 = vmatpush1.msra.mxu0 %v455
      %476 = vmatprep.subr.mxu0 0.0
      %477 = vmatpush1.msra.mxu0 %v456
      %478 = vmatprep.subr.mxu0 0.0
      %479 = vmatpush1.msra.mxu0 %v457
      %480 = vmatprep.subr.mxu0 0.0
      %481 = vmatpush1.msra.mxu0 %v458
      %482 = vmatprep.subr.mxu0 0.0
      %483 = vmatpush1.msra.mxu0 %v459
      %484 = vmatprep.subr.mxu0 0.0
      %485 = vmatpush1.msra.mxu0 %v460
      %486 = vmatprep.subr.mxu0 0.0
      %487 = vmatpush1.msra.mxu0 %v461
      %488 = vmatprep.subr.mxu0 0.0
      %489 = vmatpush1.msra.mxu0 %v462
      %490 = vmatprep.subr.mxu0 0.0
      %491 = vmatpush1.msra.mxu0 %v463
      %492 = vmatprep.subr.mxu0 0.0
      %493 = vmatpush1.msra.mxu0 %v464
      %494 = vmatprep.subr.mxu0 0.0
      %495 = vmatpush1.msra.mxu0 %v465
      %496 = vmatprep.subr.mxu0 0.0
      %497 = vmatpush1.msra.mxu0 %v466
      %498 = vmatprep.subr.mxu0 0.0
      %499 = vmatpush1.msra.mxu0 %v467
      %500 = vmatprep.subr.mxu0 0.0
      %501 = vmatpush1.msra.mxu0 0.0
      %502 = vmatprep.subr.mxu0 0.0
      %503 = vmatpush1.msra.mxu0 0.0
      %504 = vmatprep.subr.mxu0 0.0
      %505 = vmatpush1.msra.mxu0 0.0
      %506 = vmatprep.subr.mxu0 0.0
      %507 = vmatpush1.msra.mxu0 0.0
      %508 = vmatprep.subr.mxu0 0.0
      %509 = vmatpush1.msra.mxu0 0.0
      %510 = vmatprep.subr.mxu0 0.0
      %511 = vmatpush1.msra.mxu0 0.0
      %512 = vmatprep.subr.mxu0 0.0
      %513 = vmatpush1.msra.mxu0 0.0
      %514 = vmatprep.subr.mxu0 0.0
      %515 = vmatpush1.msra.mxu0 0.0
      %516 = vmatprep.subr.mxu0 0.0
      %517 = vmatpush1.msra.mxu0 0.0
      %518 = vmatprep.subr.mxu0 0.0
      %519 = vmatpush1.msra.mxu0 0.0
      %520 = vmatprep.subr.mxu0 0.0
      %521 = vmatpush1.msra.mxu0 0.0
      %522 = vmatprep.subr.mxu0 0.0
      %523 = vmatpush1.msra.mxu0 0.0
      %524 = vmatprep.subr.mxu0 0.0
      %525 = vmatpush1.msra.mxu0 0.0
      %526 = vmatprep.subr.mxu0 0.0
      %527 = vmatpush1.msra.mxu0 0.0
      %528 = vmatprep.subr.mxu0 0.0
      %529 = vmatpush1.msra.mxu0 0.0
      %530 = vmatprep.subr.mxu0 0.0
      %531 = vmatpush1.msra.mxu0 0.0
      %532 = vmatprep.mubr.f32.mxu0 0.0
      %533 = vmatmul.mubr.f32.gmra.mrb[0].mxu0 %v449
      %v534 = vpop.f32.mrb[0].mxu0
      %v535 = vadd.f32 0.0, %v534
      %v536 = vpop.f32.mrb[0].mxu0
      %537 = vmatprep.mubr.f32.mxu0 0.0
      %538 = vmatmul.mubr.f32.gmra.mrb[0].mxu0 %v450
      %v539 = vpop.f32.mrb[0].mxu0
      %v540 = vadd.f32 0.0, %v539
      %v541 = vpop.f32.mrb[0].mxu0
      %542 = vdwg.mxu0
      %v543 = vadd.f32 %v441, %v535
      %v544 = vadd.f32 %v446, %v540
      %545 = vst [vmem:[%s231] sm:$0xff] %v543
      %546 = vst [vmem:[%s231 + $0x8] sm:$0xff] %v544
      %v547 = vadd.f32 %v543, %v544
      %v548 = vrot.slane %v547, 4
      %v549 = vadd.f32 %v547, %v548
      %v550 = vrot.slane %v549, 2
      %v551 = vadd.f32 %v549, %v550
      %v552 = vrot.slane %v551, 1
      %v553 = vadd.f32 %v551, %v552
      %v554 = vmul.f32 %v553, 0.0625
      %v555 = vsub.f32 %v543, %v554
      %v556 = vsub.f32 %v544, %v554
      %v557 = vmul.f32 %v555, %v555
      %v558 = vmul.f32 %v556, %v556
      %v559 = vadd.f32 %v557, %v558
      %v560 = vrot.slane %v559, 4
      %v561 = vadd.f32 %v559, %v560
      %v562 = vrot.slane %v561, 2
      %v563 = vadd.f32 %v561, %v562
      %v564 = vrot.slane %v563, 1
      %v565 = vadd.f32 %v563, %v564
      %566 = vst [vmem:[%s235] sm:$0x1] %v554
      %567 = vst [vmem:[%s235 + $0x1] sm:$0x1] %v565
      %p568 = scmp.lt.s32.totalorder %s17, 1
      %s569 = scalar_select %p568, %s17, 1
      %s570 = smul.addr %s569, 2
      %s571 = smul.addr %s570, 8
      %s572 = scalar_lea.vmem %s4, %s571
      %p573 = scmp.lt.s32.totalorder %s17, 1
      %s574 = scalar_select %p573, %s17, 1
      %s575 = smul.addr %s574, 2
      %s576 = scalar_lea.vmem %s5, %s575
      // Predicated region
      $region37: #{residual_block.4} parent=35 // pred_check
        %p577 = pneg %p124
      $region38: #{residual_block.4} parent=35 // pred_check_branch
        %579 = sbr.rel (%p577) target = $region40
      $region39: #{residual_block.4} parent=35 // pred_region
        _
      $region40: #{residual_block.4} parent=35 // pred_fallthru
        _
      // Predicated region
      $region41: #{residual_block.4} parent=35 // pred_check
        %p580 = pneg %p150
      $region42: #{residual_block.4} parent=35 // pred_check_branch
        %582 = sbr.rel (%p580) target = $region44
      $region43: #{residual_block.4} parent=35 // pred_region
        _
      $region44: #{residual_block.4} parent=35 // pred_fallthru
        _
    $region36: #{residual_block.4} parent=5 // pred_fallthru
      _
    %p583 = scmp.le.s32.totalorder 2, %s12
    // Predicated region
    $region45: #{residual_block.4} parent=5 // pred_check
      %p584 = pneg %p583
    $region46: #{residual_block.4} parent=5 // pred_check_branch
      %586 = sbr.rel (%p584) target = $region48
    $region47: #{residual_block.4} parent=5 // pred_region
      %s587 = ssub.s32 %s12, 2
      // Predicated region
      $region49: #{residual_block.4} parent=47 // pred_check
        %p588 = pneg %p130
      $region50: #{residual_block.4} parent=47 // pred_check_branch
        %590 = sbr.rel (%p588) target = $region52
      $region51: #{residual_block.4} parent=47 // pred_region
        %p591 = scmp.lt.s32.totalorder %s18, 1
        %s592 = scalar_select %p591, %s18, 1
        %s593 = smul.addr %s592, 2
        %s594 = smul.addr %s593, 8
        %s595 = scalar_lea.vmem %s4, %s594
      $region52: #{residual_block.4} parent=47 // pred_fallthru
        _
      // Predicated region
      $region53: #{residual_block.4} parent=47 // pred_check
        %p596 = pneg %p156
      $region54: #{residual_block.4} parent=47 // pred_check_branch
        %598 = sbr.rel (%p596) target = $region56
      $region55: #{residual_block.4} parent=47 // pred_region
        %p599 = scmp.lt.s32.totalorder %s18, 1
        %s600 = scalar_select %p599, %s18, 1
        %s601 = smul.addr %s600, 2
        %s602 = scalar_lea.vmem %s5, %s601
      $region56: #{residual_block.4} parent=47 // pred_fallthru
        _
    $region48: #{residual_block.4} parent=5 // pred_fallthru
      _
  $region6: #{residual_block.4} parent=0 // loop_footer
    %s16 = sadd.s32 1, %s12
  $region7: #{residual_block.4} parent=0 // loop_footer_branch
    %11 = sbr.rel target = $region3
  $region8: #{residual_block.4} parent=0 // loop_exit
    _

// kernel: residual_block.5
$region0: #{residual_block.5}
  #allocation0 [shape = 'u32[]', space=smem, size = 0x4, offset = 0x4, fixed_abs, tag = 'smem constant byte address 0x4 - core index']
  #allocation1 [shape = 'u32[144,128]{1,0:T(1,128)}', space=vmem, size = 0x12000, scoped, tag = 'internal scratch']
  %s0 = inlined_call_operand.vmem [shape: f32[2,16,128], index: 0, kind: input, shape index: {}]
  %s1 = inlined_call_operand.vmem [shape: f32[2,16,128], index: 1, kind: input, shape index: {}]
  %s2 = inlined_call_operand.vmem [shape: f32[1,128], index: 2, kind: input, shape index: {}]
  %s3 = inlined_call_operand.vmem [shape: f32[1,128], index: 3, kind: input, shape index: {}]
  %s4 = inlined_call_operand.vmem [shape: f32[2,16,128], index: 4, kind: output, shape index: {}]
  %s5 = sld [smem:[#allocation0]]
  $region49: #{residual_block.5} parent=0
    _
  %s7 = ssub.s32 1, %s5
  %s8 = scalar_select 0, %s7, %s5
  loop: start=0, step=1, limit=4
  $region2: #{residual_block.5} parent=0 // loop_pre_header
    _
  $region3: #{residual_block.5} parent=0 // loop_header
    %s10 = sphi 0, %s14
    %p11 = scmp.ge.s32.totalorder %s10, 4
    %s20 = sphi 0, %s22
    %s23 = sphi 0, %s20
    %s24 = sphi 0, %s23
    %s40 = sphi 0, %s24
    %s46 = sphi 0, %s48
    %s49 = sphi 0, %s46
    %s50 = sphi 0, %s49
    %s66 = sphi 0, %s50
    %s70 = sphi 0, %s70
    %s72 = sphi 0, %s70
    %s73 = sphi 0, %s72
    %s87 = sphi 0, %s73
    %s91 = sphi 0, %s91
    %s93 = sphi 0, %s91
    %s94 = sphi 0, %s93
    %s108 = sphi 0, %s94
    %s114 = sphi 0, %s116
    %s117 = sphi 0, %s114
    %s118 = sphi 0, %s117
    %s134 = sphi 0, %s118
  $region4: #{residual_block.5} parent=0 // loop_header_branch
    %13 = sbr.rel (%p11) target = $region8
  $region5: #{residual_block.5} parent=0 // loop_body
    %s15 = ssub.s32 %s10, 1
    %s16 = ssub.s32 %s10, 2
    %s17 = sadd.s32 %s10, 1
    %s18 = ssub.s32 %s10, %s17
    %p19 = scmp.eq.s32.totalorder %s18, 0
    %s21 = sadd.s32 %s20, 1
    %s22 = scalar_select %p19, %s20, %s21
    %p25 = pneg %p19
    %p26 = scmp.eq.s32.totalorder %s10, 1
    %p27 = por %p25, %p26
    %p28 = scmp.ne.s32.totalorder %s20, %s23
    %p29 = scmp.eq.s32.totalorder %s10, 0
    %p30 = por %p28, %p29
    %p31 = scmp.ne.s32.totalorder %s20, %s23
    %p32 = scmp.eq.s32.totalorder %s15, 1
    %p33 = por %p31, %p32
    %p34 = scmp.ne.s32.totalorder %s23, %s24
    %p35 = scmp.eq.s32.totalorder %s15, 0
    %p36 = por %p34, %p35
    %p37 = scmp.ne.s32.totalorder %s23, %s24
    %p38 = scmp.eq.s32.totalorder %s16, 1
    %p39 = por %p37, %p38
    %p41 = scmp.ne.s32.totalorder %s24, %s40
    %p42 = scmp.eq.s32.totalorder %s16, 0
    %p43 = por %p41, %p42
    %s44 = ssub.s32 %s10, %s17
    %p45 = scmp.eq.s32.totalorder %s44, 0
    %s47 = sadd.s32 %s46, 1
    %s48 = scalar_select %p45, %s46, %s47
    %p51 = pneg %p45
    %p52 = scmp.eq.s32.totalorder %s10, 1
    %p53 = por %p51, %p52
    %p54 = scmp.ne.s32.totalorder %s46, %s49
    %p55 = scmp.eq.s32.totalorder %s10, 0
    %p56 = por %p54, %p55
    %p57 = scmp.ne.s32.totalorder %s46, %s49
    %p58 = scmp.eq.s32.totalorder %s15, 1
    %p59 = por %p57, %p58
    %p60 = scmp.ne.s32.totalorder %s49, %s50
    %p61 = scmp.eq.s32.totalorder %s15, 0
    %p62 = por %p60, %p61
    %p63 = scmp.ne.s32.totalorder %s49, %s50
    %p64 = scmp.eq.s32.totalorder %s16, 1
    %p65 = por %p63, %p64
    %p67 = scmp.ne.s32.totalorder %s50, %s66
    %p68 = scmp.eq.s32.totalorder %s16, 0
    %p69 = por %p67, %p68
    %s71 = sadd.s32 %s70, 1
    %p74 = scmp.eq.s32.totalorder %s10, 1
    %p75 = scmp.ne.s32.totalorder %s70, %s72
    %p76 = scmp.eq.s32.totalorder %s10, 0
    %p77 = por %p75, %p76
    %p78 = scmp.ne.s32.totalorder %s70, %s72
    %p79 = scmp.eq.s32.totalorder %s15, 1
    %p80 = por %p78, %p79
    %p81 = scmp.ne.s32.totalorder %s72, %s73
    %p82 = scmp.eq.s32.totalorder %s15, 0
    %p83 = por %p81, %p82
    %p84 = scmp.ne.s32.totalorder %s72, %s73
    %p85 = scmp.eq.s32.totalorder %s16, 1
    %p86 = por %p84, %p85
    %p88 = scmp.ne.s32.totalorder %s73, %s87
    %p89 = scmp.eq.s32.totalorder %s16, 0
    %p90 = por %p88, %p89
    %s92 = sadd.s32 %s91, 1
    %p95 = scmp.eq.s32.totalorder %s10, 1
    %p96 = scmp.ne.s32.totalorder %s91, %s93
    %p97 = scmp.eq.s32.totalorder %s10, 0
    %p98 = por %p96, %p97
    %p99 = scmp.ne.s32.totalorder %s91, %s93
    %p100 = scmp.eq.s32.totalorder %s15, 1
    %p101 = por %p99, %p100
    %p102 = scmp.ne.s32.totalorder %s93, %s94
    %p103 = scmp.eq.s32.totalorder %s15, 0
    %p104 = por %p102, %p103
    %p105 = scmp.ne.s32.totalorder %s93, %s94
    %p106 = scmp.eq.s32.totalorder %s16, 1
    %p107 = por %p105, %p106
    %p109 = scmp.ne.s32.totalorder %s94, %s108
    %p110 = scmp.eq.s32.totalorder %s16, 0
    %p111 = por %p109, %p110
    %s112 = ssub.s32 %s10, %s17
    %p113 = scmp.eq.s32.totalorder %s112, 0
    %s115 = sadd.s32 %s114, 1
    %s116 = scalar_select %p113, %s114, %s115
    %p119 = pneg %p113
    %p120 = scmp.eq.s32.totalorder %s10, 1
    %p121 = por %p119, %p120
    %p122 = scmp.ne.s32.totalorder %s114, %s117
    %p123 = scmp.eq.s32.totalorder %s10, 0
    %p124 = por %p122, %p123
    %p125 = scmp.ne.s32.totalorder %s114, %s117
    %p126 = scmp.eq.s32.totalorder %s15, 1
    %p127 = por %p125, %p126
    %p128 = scmp.ne.s32.totalorder %s117, %s118
    %p129 = scmp.eq.s32.totalorder %s15, 0
    %p130 = por %p128, %p129
    %p131 = scmp.ne.s32.totalorder %s117, %s118
    %p132 = scmp.eq.s32.totalorder %s16, 1
    %p133 = por %p131, %p132
    %p135 = scmp.ne.s32.totalorder %s118, %s134
    %p136 = scmp.eq.s32.totalorder %s16, 0
    %p137 = por %p135, %p136
    %p138 = scmp.le.s32.totalorder 1, %s10
    %p139 = scmp.lt.s32.totalorder %s10, 3
    %p140 = pnand %p138, %p139
    %p141 = pneg %p140
    // Predicated region
    $region9: #{residual_block.5} parent=5 // pred_check
      _
    $region10: #{residual_block.5} parent=5 // pred_check_branch
      %143 = sbr.rel (%p140) target = $region12
    $region11: #{residual_block.5} parent=5 // pred_region
      %s144 = ssub.s32 %s10, 1
      // Predicated region
      $region13: #{residual_block.5} parent=11 // pred_check
        %p145 = pneg %p83
      $region14: #{residual_block.5} parent=11 // pred_check_branch
        %147 = sbr.rel (%p145) target = $region16
      $region15: #{residual_block.5} parent=11 // pred_region
        _
      $region16: #{residual_block.5} parent=11 // pred_fallthru
        _
      // Predicated region
      $region17: #{residual_block.5} parent=11 // pred_check
        %p148 = pneg %p104
      $region18: #{residual_block.5} parent=11 // pred_check_branch
        %150 = sbr.rel (%p148) target = $region20
      $region19: #{residual_block.5} parent=11 // pred_region
        _
      $region20: #{residual_block.5} parent=11 // pred_fallthru
        _
    $region12: #{residual_block.5} parent=5 // pred_fallthru
      _
    %p151 = scmp.lt.s32.totalorder %s10, 2
    // Predicated region
    $region21: #{residual_block.5} parent=5 // pred_check
      %p152 = pneg %p151
    $region22: #{residual_block.5} parent=5 // pred_check_branch
      %154 = sbr.rel (%p152) target = $region24
    $region23: #{residual_block.5} parent=5 // pred_region
      // Predicated region
      $region25: #{residual_block.5} parent=23 // pred_check
        %p155 = pneg %p30
      $region26: #{residual_block.5} parent=23 // pred_check_branch
        %157 = sbr.rel (%p155) target = $region28
      $region27: #{residual_block.5} parent=23 // pred_region
        %p158 = scmp.lt.s32.totalorder %s10, 1
        %s159 = scalar_select %p158, %s10, 1
        %s160 = smul.addr %s159, 2
        %s161 = smul.addr %s160, 8
        %s162 = scalar_lea.vmem %s0, %s161
      $region28: #{residual_block.5} parent=23 // pred_fallthru
        _
      // Predicated region
      $region29: #{residual_block.5} parent=23 // pred_check
        %p163 = pneg %p56
      $region30: #{residual_block.5} parent=23 // pred_check_branch
        %165 = sbr.rel (%p163) target = $region32
      $region31: #{residual_block.5} parent=23 // pred_region
        %p166 = scmp.lt.s32.totalorder %s10, 1
        %s167 = scalar_select %p166, %s10, 1
        %s168 = smul.addr %s167, 2
        %s169 = smul.addr %s168, 8
        %s170 = scalar_lea.vmem %s1, %s169
      $region32: #{residual_block.5} parent=23 // pred_fallthru
        _
    $region24: #{residual_block.5} parent=5 // pred_fallthru
      _
    %p171 = scmp.le.s32.totalorder 1, %s10
    %p172 = scmp.lt.s32.totalorder %s10, 3
    %p173 = pnand %p171, %p172
    %p174 = pneg %p173
    // Predicated region
    $region33: #{residual_block.5} parent=5 // pred_check
      _
    $region34: #{residual_block.5} parent=5 // pred_check_branch
      %176 = sbr.rel (%p173) target = $region36
    $region35: #{residual_block.5} parent=5 // pred_region
      %s177 = ssub.s32 %s10, 1
      %p178 = scmp.lt.s32.totalorder %s15, 1
      %s179 = scalar_select %p178, %s15, 1
      %s180 = smul.addr %s179, 2
      %s181 = smul.addr %s180, 8
      %s182 = scalar_lea.vmem %s0, %s181
      %p183 = pneg %p36
      %p184 = pneg %p33
      %p185 = scmp.lt.s32.totalorder %s15, 1
      %s186 = scalar_select %p185, %s15, 1
      %s187 = smul.addr %s186, 2
      %s188 = smul.addr %s187, 8
      %s189 = scalar_lea.vmem %s1, %s188
      %p190 = pneg %p62
      %p191 = pneg %p59
      %p192 = pneg %p83
      %p193 = pneg %p80
      %p194 = pneg %p104
      %p195 = pneg %p101
      %p196 = pneg %p130
      %p197 = pneg %p127
      %p198 = scmp.lt.s32.totalorder %s15, 1
      %s199 = scalar_select %p198, %s15, 1
      %s200 = smul.addr %s199, 2
      %s201 = smul.addr %s200, 8
      %s202 = scalar_lea.vmem %s4, %s201
      %p203 = scmp.lt.s32.totalorder %s15, 1
      %s204 = scalar_select %p203, %s15, 1
      %s205 = smul.addr %s204, 2
      %s206 = smul.addr %s205, 8
      %s207 = scalar_lea.vmem %s0, %s206
      %p208 = scmp.lt.s32.totalorder %s15, 1
      %s209 = scalar_select %p208, %s15, 1
      %s210 = smul.addr %s209, 2
      %s211 = smul.addr %s210, 8
      %s212 = scalar_lea.vmem %s1, %s211
      %p213 = scmp.lt.s32.totalorder %s15, 1
      %s214 = scalar_select %p213, %s15, 1
      %s215 = smul.addr %s214, 2
      %s216 = smul.addr %s215, 8
      %s217 = scalar_lea.vmem %s4, %s216
      %v218 = vld [vmem:[%s207] sm:$0xff]
      %v219 = vld [vmem:[%s207 + $0x8] sm:$0xff]
      %v220 = vld [vmem:[%s2] sm:$0x1]
      %v222 = vlaneseq
      %v223 = vshrl.u32 %v222, 7
      %v224 = vsub.s32 0, %v223
      %v225 = vrot.slane %v220, %v224
      %v227 = vmul.f32 %v218, %v225
      %v228 = vmul.f32 %v219, %v225
      %v229 = vld [vmem:[%s3] sm:$0x1]
      %v231 = vlaneseq
      %v232 = vshrl.u32 %v231, 7
      %v233 = vsub.s32 0, %v232
      %v234 = vrot.slane %v229, %v233
      %v236 = vadd.f32 %v227, %v234
      %v237 = vadd.f32 %v228, %v234
      %v238 = vld [vmem:[%s212] sm:$0xff]
      %v239 = vld [vmem:[%s212 + $0x8] sm:$0xff]
      %v240 = vadd.f32 %v236, %v238
      %v241 = vadd.f32 %v237, %v239
      %v242 = vmax.f32 %v240, 0.0
      %v243 = vmax.f32 %v241, 0.0
      %244 = vst [vmem:[%s217] sm:$0xff] %v242
      %245 = vst [vmem:[%s217 + $0x8] sm:$0xff] %v243
      %p246 = scmp.lt.s32.totalorder %s15, 1
      %s247 = scalar_select %p246, %s15, 1
      %s248 = smul.addr %s247, 2
      %s249 = smul.addr %s248, 8
      %s250 = scalar_lea.vmem %s4, %s249
      // Predicated region
      $region37: #{residual_block.5} parent=35 // pred_check
        %p251 = pneg %p127
      $region38: #{residual_block.5} parent=35 // pred_check_branch
        %253 = sbr.rel (%p251) target = $region40
      $region39: #{residual_block.5} parent=35 // pred_region
        _
      $region40: #{residual_block.5} parent=35 // pred_fallthru
        _
    $region36: #{residual_block.5} parent=5 // pred_fallthru
      _
    %p254 = scmp.le.s32.totalorder 2, %s10
    // Predicated region
    $region41: #{residual_block.5} parent=5 // pred_check
      %p255 = pneg %p254
    $region42: #{residual_block.5} parent=5 // pred_check_branch
      %257 = sbr.rel (%p255) target = $region44
    $region43: #{residual_block.5} parent=5 // pred_region
      %s258 = ssub.s32 %s10, 2
      // Predicated region
      $region45: #{residual_block.5} parent=43 // pred_check
        %p259 = pneg %p133
      $region46: #{residual_block.5} parent=43 // pred_check_branch
        %261 = sbr.rel (%p259) target = $region48
      $region47: #{residual_block.5} parent=43 // pred_region
        %p262 = scmp.lt.s32.totalorder %s16, 1
        %s263 = scalar_select %p262, %s16, 1
        %s264 = smul.addr %s263, 2
        %s265 = smul.addr %s264, 8
        %s266 = scalar_lea.vmem %s4, %s265
      $region48: #{residual_block.5} parent=43 // pred_fallthru
        _
    $region44: #{residual_block.5} parent=5 // pred_fallthru
      _
  $region6: #{residual_block.5} parent=0 // loop_footer
    %s14 = sadd.s32 1, %s10
  $region7: #{residual_block.5} parent=0 // loop_footer_branch
    %9 = sbr.rel target = $region3
  $region8: #{residual_block.5} parent=0 // loop_exit
    _

</llo_original>
